<compile_context>
chip_gen: v6e
topology: v6e:2x2x1
jax: 0.10.0
libtpu: 0.0.40
codegen_flags: <defaults>
</compile_context>

<pallas_src>
import jax
import jax.numpy as jnp
from jax.experimental import pallas as pl
from jax.experimental.pallas import tpu as pltpu


def _round_up(n: int, m: int) -> int:
    return ((n + m - 1) // m) * m


def encoder_kernel(x_ref, w1_ref, b1_ref, w2_ref, b2_ref, o_ref):
    # fc1: cast the f32 x tile to bf16 in-kernel, MXU matmul with f32
    # accumulation, bias + ReLU in f32 (VPU).
    x = x_ref[...].astype(jnp.bfloat16)
    h = jnp.dot(x, w1_ref[...], preferred_element_type=jnp.float32)
    h = jnp.maximum(h + b1_ref[...], 0.0)
    # fc2: bf16 into the MXU, f32 accumulation, bias in f32.
    out = jnp.dot(h.astype(jnp.bfloat16), w2_ref[...],
                  preferred_element_type=jnp.float32)
    o_ref[...] = (out + b2_ref[...]).astype(o_ref.dtype)


def _resident_spec(shape, single_buffer):
    # Constant block index -> the operand is resident across the whole grid.
    index_map = lambda i: (0,) * len(shape)
    if single_buffer:
        return pl.BlockSpec(shape, index_map, pipeline_mode=pl.Buffered(1))
    return pl.BlockSpec(shape, index_map)


def _build_call(B, D, H, Lp, tm, out_dtype, single_buffer):
    grid = (pl.cdiv(B, tm),)

    # VMEM budget sized from the actual buffers (x/out tiles double-buffered,
    # resident weights single- or double-buffered, in-kernel intermediates),
    # with 1.5x headroom, capped at ~7/8 of this chip's physical VMEM.
    w_mult = 1 if single_buffer else 2
    buf_bytes = (
        2 * tm * D * 4 + 2 * tm * Lp * 4                         # x / out tiles (f32)
        + w_mult * (D * H * 2 + H * Lp * 2 + H * 4 + Lp * 4)     # weights / biases
        + tm * D * 2 + tm * H * 4 + tm * H * 2 + tm * Lp * 4     # intermediates
    )
    try:
        vmem_cap = int(pltpu.get_tpu_info().vmem_capacity_bytes)
    except Exception:
        vmem_cap = 64 * 1024 * 1024  # conservative fallback (v7x per-TC)
    vmem_limit = int(min(vmem_cap * 7 // 8,
                         max(32 * 1024 * 1024, int(1.5 * buf_bytes))))

    return pl.pallas_call(
        encoder_kernel,
        out_shape=jax.ShapeDtypeStruct((B, Lp), out_dtype),
        grid_spec=pltpu.PrefetchScalarGridSpec(
            num_scalar_prefetch=0,
            grid=grid,
            in_specs=[
                pl.BlockSpec((tm, D), lambda i: (i, 0)),     # x tile (f32, streams)
                _resident_spec((D, H), single_buffer),       # W1 (bf16, resident)
                _resident_spec((1, H), single_buffer),       # b1 (f32)
                _resident_spec((H, Lp), single_buffer),      # W2 (bf16, resident)
                _resident_spec((1, Lp), single_buffer),      # b2 (f32)
            ],
            out_specs=pl.BlockSpec((tm, Lp), lambda i: (i, 0)),
        ),
        compiler_params=pltpu.CompilerParams(
            # Batch axis is embarrassingly parallel -> shards across the two
            # TensorCores on v7x (keep tm small enough that the grid has >= 2
            # steps per core at real batch sizes).
            dimension_semantics=("parallel",),
            vmem_limit_bytes=vmem_limit,
        ),
    )


def encoder_forward(x, w1, b1, w2, b2, *, tm=512):
    """relu(x @ w1 + b1) @ w2 + b2.

    x: (B, D) f32; w1: (D, H); b1: (H,)/(1,H); w2: (H, L); b2: (L,)/(1,L).
    Weights are (in_features, out_features) = PyTorch weight.T.
    """
    B, D = x.shape
    H = w1.shape[1]
    L = w2.shape[1]
    out_dtype = x.dtype

    # Batch tile: multiple of 8, clamped for tiny batches. The grid uses cdiv,
    # so a non-divisible batch just gives one Pallas-masked partial edge block
    # (no padded copy of x, no garbage-row compute beyond < 8 rows equivalent).
    tm_eff = min(_round_up(tm, 8), _round_up(B, 8))

    # Lane-dense output: pad the latent dim to a multiple of 128 (zero columns
    # in W2/b2) so writeback is full-width unmasked vst; columns sliced off.
    Lp = _round_up(max(L, 128), 128)

    # Resident bf16 weights for the MXU; biases stay f32.
    w1_b = w1.astype(jnp.bfloat16)
    w2_p = jnp.zeros((H, Lp), jnp.bfloat16).at[:, :L].set(w2.astype(jnp.bfloat16))
    b1_r = jnp.reshape(b1, (1, H)).astype(jnp.float32)
    b2_p = jnp.zeros((1, Lp), jnp.float32).at[:, :L].set(
        jnp.reshape(b2, (1, L)).astype(jnp.float32))

    try:
        call = _build_call(B, D, H, Lp, tm_eff, out_dtype, single_buffer=True)
        out = call(x, w1_b, b1_r, w2_p, b2_p)
    except Exception:
        # Fallback if pipeline_mode=pl.Buffered(1) is unsupported in this JAX
        # build; double-buffered resident weights, otherwise identical.
        call = _build_call(B, D, H, Lp, tm_eff, out_dtype, single_buffer=False)
        out = call(x, w1_b, b1_r, w2_p, b2_p)

    # Strip the lane padding of the latent dimension.
    return out[:, :L]


if __name__ == "__main__":
    # Small shapes consistent with the module (scaled down from 3584/1024/32).
    # Batch is deliberately NOT a multiple of the tile to exercise the
    # partial-edge-block path.
    batch = 300
    input_dim = 256
    hidden_dim = 128
    latent_dim = 32

    key = jax.random.PRNGKey(0)
    kx, kw1, kb1, kw2, kb2 = jax.random.split(key, 5)

    x = jax.random.normal(kx, (batch, input_dim), dtype=jnp.float32)

    # Deterministic parameter init (uniform like PyTorch Linear default scale).
    lim1 = 1.0 / (input_dim ** 0.5)
    lim2 = 1.0 / (hidden_dim ** 0.5)
    w1 = jax.random.uniform(kw1, (input_dim, hidden_dim), jnp.float32, -lim1, lim1)
    b1 = jax.random.uniform(kb1, (hidden_dim,), jnp.float32, -lim1, lim1)
    w2 = jax.random.uniform(kw2, (hidden_dim, latent_dim), jnp.float32, -lim2, lim2)
    b2 = jax.random.uniform(kb2, (latent_dim,), jnp.float32, -lim2, lim2)

    out = encoder_forward(x, w1, b1, w2, b2)
    out = jax.block_until_ready(out)

    # Pure-JAX reference with the same bf16 operand quantization, f32 math.
    xb = x.astype(jnp.bfloat16).astype(jnp.float32)
    w1b = w1.astype(jnp.bfloat16).astype(jnp.float32)
    w2b = w2.astype(jnp.bfloat16).astype(jnp.float32)
    ref = jnp.maximum(xb @ w1b + b1[None, :], 0.0) @ w2b + b2[None, :]

    assert out.shape == (batch, latent_dim)
    assert jnp.allclose(out, ref, atol=3e-2, rtol=3e-2), "mismatch vs reference"

    print("KERNEL_OK")
</pallas_src>

<mosaic_0001>
module attributes {stable_mosaic.version = 11 : i64} {
  func.func @encoder_kernel(%arg0: i32, %arg1: memref<304x256xf32, #tpu.memory_space<vmem>>, %arg2: memref<256x128xbf16, #tpu.memory_space<vmem>>, %arg3: memref<1x128xf32, #tpu.memory_space<vmem>>, %arg4: memref<128x128xbf16, #tpu.memory_space<vmem>>, %arg5: memref<1x128xf32, #tpu.memory_space<vmem>>, %arg6: memref<304x128xf32, #tpu.memory_space<vmem>>) attributes {dimension_semantics = [#tpu.dimension_semantics<parallel>], iteration_bounds = array<i64: 1>, scalar_prefetch = 0 : i64, scratch_operands = 0 : i64, tpu.core_type = #tpu.core_type<tc>, window_params = [{transform_indices = @transform_0, window_bounds = array<i64: 304, 256>}, {pipeline_mode = #tpu.pipeline_mode<synchronous>, transform_indices = @transform_1, window_bounds = array<i64: 256, 128>}, {pipeline_mode = #tpu.pipeline_mode<synchronous>, transform_indices = @transform_2, window_bounds = array<i64: 1, 128>}, {pipeline_mode = #tpu.pipeline_mode<synchronous>, transform_indices = @transform_3, window_bounds = array<i64: 128, 128>}, {pipeline_mode = #tpu.pipeline_mode<synchronous>, transform_indices = @transform_4, window_bounds = array<i64: 1, 128>}, {transform_indices = @transform_5, window_bounds = array<i64: 304, 128>}]} {
    %c0 = arith.constant 0 : index
    %c0_0 = arith.constant 0 : index
    %0 = vector.load %arg1[%c0, %c0_0] : memref<304x256xf32, #tpu.memory_space<vmem>>, vector<304x256xf32>
    %1 = arith.truncf %0 : vector<304x256xf32> to vector<304x256xbf16>
    %c0_1 = arith.constant 0 : index
    %c0_2 = arith.constant 0 : index
    %2 = vector.load %arg2[%c0_1, %c0_2] : memref<256x128xbf16, #tpu.memory_space<vmem>>, vector<256x128xbf16>
    %cst = arith.constant dense<0.000000e+00> : vector<304x128xf32>
    %3 = tpu.matmul %1, %2, %cst {dimension_numbers = #tpu.dot_dimension_numbers<[1], [0], [0], [1], [0, 0, 1, 1], [], []>} : vector<304x256xbf16>, vector<256x128xbf16>, vector<304x128xf32> -> vector<304x128xf32>
    %c0_3 = arith.constant 0 : index
    %c0_4 = arith.constant 0 : index
    %4 = vector.load %arg3[%c0_3, %c0_4] : memref<1x128xf32, #tpu.memory_space<vmem>>, vector<1x128xf32>
    %5 = vector.broadcast %4 : vector<1x128xf32> to vector<304x128xf32>
    %6 = arith.addf %3, %5 : vector<304x128xf32>
    %cst_5 = arith.constant 0.000000e+00 : f32
    %7 = vector.broadcast %cst_5 : f32 to vector<304x128xf32>
    %8 = arith.maximumf %6, %7 : vector<304x128xf32>
    %9 = arith.truncf %8 : vector<304x128xf32> to vector<304x128xbf16>
    %c0_6 = arith.constant 0 : index
    %c0_7 = arith.constant 0 : index
    %10 = vector.load %arg4[%c0_6, %c0_7] : memref<128x128xbf16, #tpu.memory_space<vmem>>, vector<128x128xbf16>
    %cst_8 = arith.constant dense<0.000000e+00> : vector<304x128xf32>
    %11 = tpu.matmul %9, %10, %cst_8 {dimension_numbers = #tpu.dot_dimension_numbers<[1], [0], [0], [1], [0, 0, 1, 1], [], []>} : vector<304x128xbf16>, vector<128x128xbf16>, vector<304x128xf32> -> vector<304x128xf32>
    %c0_9 = arith.constant 0 : index
    %c0_10 = arith.constant 0 : index
    %12 = vector.load %arg5[%c0_9, %c0_10] : memref<1x128xf32, #tpu.memory_space<vmem>>, vector<1x128xf32>
    %13 = vector.broadcast %12 : vector<1x128xf32> to vector<304x128xf32>
    %14 = arith.addf %11, %13 : vector<304x128xf32>
    %c0_11 = arith.constant 0 : index
    %c0_12 = arith.constant 0 : index
    %15 = vector.load %arg6[%c0_11, %c0_12] : memref<304x128xf32, #tpu.memory_space<vmem>>, vector<304x128xf32>
    tpu.vector_store %arg6[%c0_11, %c0_12], %14 {strides = array<i32>} : memref<304x128xf32, #tpu.memory_space<vmem>>, vector<304x128xf32>,
    return
  }
  func.func @transform_0(%arg0: i32) -> (i32, i32) {
    %c0_i32 = arith.constant 0 : i32
    %c0_i32_0 = arith.constant 0 : i32
    return %arg0, %c0_i32 : i32, i32
  }
  func.func @transform_1(%arg0: i32) -> (i32, i32) {
    %c0_i32 = arith.constant 0 : i32
    %c0_i32_0 = arith.constant 0 : i32
    %c0_i32_1 = arith.constant 0 : i32
    return %c0_i32, %c0_i32_0 : i32, i32
  }
  func.func @transform_2(%arg0: i32) -> (i32, i32) {
    %c0_i32 = arith.constant 0 : i32
    %c0_i32_0 = arith.constant 0 : i32
    %c0_i32_1 = arith.constant 0 : i32
    return %c0_i32, %c0_i32_0 : i32, i32
  }
  func.func @transform_3(%arg0: i32) -> (i32, i32) {
    %c0_i32 = arith.constant 0 : i32
    %c0_i32_0 = arith.constant 0 : i32
    %c0_i32_1 = arith.constant 0 : i32
    return %c0_i32, %c0_i32_0 : i32, i32
  }
  func.func @transform_4(%arg0: i32) -> (i32, i32) {
    %c0_i32 = arith.constant 0 : i32
    %c0_i32_0 = arith.constant 0 : i32
    %c0_i32_1 = arith.constant 0 : i32
    return %c0_i32, %c0_i32_0 : i32, i32
  }
  func.func @transform_5(%arg0: i32) -> (i32, i32) {
    %c0_i32 = arith.constant 0 : i32
    %c0_i32_0 = arith.constant 0 : i32
    return %arg0, %c0_i32 : i32, i32
  }
}

module attributes {stable_mosaic.version = 11 : i64} {
  func.func @encoder_kernel(%arg0: i32, %arg1: memref<304x256xf32, #tpu.memory_space<vmem>>, %arg2: memref<256x128xbf16, #tpu.memory_space<vmem>>, %arg3: memref<1x128xf32, #tpu.memory_space<vmem>>, %arg4: memref<128x128xbf16, #tpu.memory_space<vmem>>, %arg5: memref<1x128xf32, #tpu.memory_space<vmem>>, %arg6: memref<304x128xf32, #tpu.memory_space<vmem>>) attributes {dimension_semantics = [#tpu.dimension_semantics<parallel>], iteration_bounds = array<i64: 1>, scalar_prefetch = 0 : i64, scratch_operands = 0 : i64, tpu.core_type = #tpu.core_type<tc>, window_params = [{transform_indices = @transform_0, window_bounds = array<i64: 304, 256>}, {pipeline_mode = #tpu.pipeline_mode<synchronous>, transform_indices = @transform_1, window_bounds = array<i64: 256, 128>}, {pipeline_mode = #tpu.pipeline_mode<synchronous>, transform_indices = @transform_2, window_bounds = array<i64: 1, 128>}, {pipeline_mode = #tpu.pipeline_mode<synchronous>, transform_indices = @transform_3, window_bounds = array<i64: 128, 128>}, {pipeline_mode = #tpu.pipeline_mode<synchronous>, transform_indices = @transform_4, window_bounds = array<i64: 1, 128>}, {transform_indices = @transform_5, window_bounds = array<i64: 304, 128>}]} {
    %c0 = arith.constant 0 : index
    %c0_0 = arith.constant 0 : index
    %0 = vector.load %arg1[%c0, %c0_0] : memref<304x256xf32, #tpu.memory_space<vmem>>, vector<304x256xf32>
    %1 = arith.truncf %0 : vector<304x256xf32> to vector<304x256xbf16>
    %c0_1 = arith.constant 0 : index
    %c0_2 = arith.constant 0 : index
    %2 = vector.load %arg2[%c0_1, %c0_2] : memref<256x128xbf16, #tpu.memory_space<vmem>>, vector<256x128xbf16>
    %cst = arith.constant dense<0.000000e+00> : vector<304x128xf32>
    %3 = tpu.matmul %1, %2, %cst {dimension_numbers = #tpu.dot_dimension_numbers<[1], [0], [0], [1], [0, 0, 1, 1], [], []>} : vector<304x256xbf16>, vector<256x128xbf16>, vector<304x128xf32> -> vector<304x128xf32>
    %c0_3 = arith.constant 0 : index
    %c0_4 = arith.constant 0 : index
    %4 = vector.load %arg3[%c0_3, %c0_4] : memref<1x128xf32, #tpu.memory_space<vmem>>, vector<1x128xf32>
    %5 = vector.broadcast %4 : vector<1x128xf32> to vector<304x128xf32>
    %6 = arith.addf %3, %5 : vector<304x128xf32>
    %cst_5 = arith.constant 0.000000e+00 : f32
    %7 = vector.broadcast %cst_5 : f32 to vector<304x128xf32>
    %8 = arith.maximumf %6, %7 : vector<304x128xf32>
    %9 = arith.truncf %8 : vector<304x128xf32> to vector<304x128xbf16>
    %c0_6 = arith.constant 0 : index
    %c0_7 = arith.constant 0 : index
    %10 = vector.load %arg4[%c0_6, %c0_7] : memref<128x128xbf16, #tpu.memory_space<vmem>>, vector<128x128xbf16>
    %cst_8 = arith.constant dense<0.000000e+00> : vector<304x128xf32>
    %11 = tpu.matmul %9, %10, %cst_8 {dimension_numbers = #tpu.dot_dimension_numbers<[1], [0], [0], [1], [0, 0, 1, 1], [], []>} : vector<304x128xbf16>, vector<128x128xbf16>, vector<304x128xf32> -> vector<304x128xf32>
    %c0_9 = arith.constant 0 : index
    %c0_10 = arith.constant 0 : index
    %12 = vector.load %arg5[%c0_9, %c0_10] : memref<1x128xf32, #tpu.memory_space<vmem>>, vector<1x128xf32>
    %13 = vector.broadcast %12 : vector<1x128xf32> to vector<304x128xf32>
    %14 = arith.addf %11, %13 : vector<304x128xf32>
    %c0_11 = arith.constant 0 : index
    %c0_12 = arith.constant 0 : index
    %15 = vector.load %arg6[%c0_11, %c0_12] : memref<304x128xf32, #tpu.memory_space<vmem>>, vector<304x128xf32>
    tpu.vector_store %arg6[%c0_11, %c0_12], %14 {strides = array<i32>} : memref<304x128xf32, #tpu.memory_space<vmem>>, vector<304x128xf32>,
    return
  }
  func.func @transform_0(%arg0: i32) -> (i32, i32) {
    %c0_i32 = arith.constant 0 : i32
    %c0_i32_0 = arith.constant 0 : i32
    return %arg0, %c0_i32 : i32, i32
  }
  func.func @transform_1(%arg0: i32) -> (i32, i32) {
    %c0_i32 = arith.constant 0 : i32
    %c0_i32_0 = arith.constant 0 : i32
    %c0_i32_1 = arith.constant 0 : i32
    return %c0_i32, %c0_i32_0 : i32, i32
  }
  func.func @transform_2(%arg0: i32) -> (i32, i32) {
    %c0_i32 = arith.constant 0 : i32
    %c0_i32_0 = arith.constant 0 : i32
    %c0_i32_1 = arith.constant 0 : i32
    return %c0_i32, %c0_i32_0 : i32, i32
  }
  func.func @transform_3(%arg0: i32) -> (i32, i32) {
    %c0_i32 = arith.constant 0 : i32
    %c0_i32_0 = arith.constant 0 : i32
    %c0_i32_1 = arith.constant 0 : i32
    return %c0_i32, %c0_i32_0 : i32, i32
  }
  func.func @transform_4(%arg0: i32) -> (i32, i32) {
    %c0_i32 = arith.constant 0 : i32
    %c0_i32_0 = arith.constant 0 : i32
    %c0_i32_1 = arith.constant 0 : i32
    return %c0_i32, %c0_i32_0 : i32, i32
  }
  func.func @transform_5(%arg0: i32) -> (i32, i32) {
    %c0_i32 = arith.constant 0 : i32
    %c0_i32_0 = arith.constant 0 : i32
    return %arg0, %c0_i32 : i32, i32
  }
}

</mosaic_0001>

<llo_original>
// kernel: tpu_custom_call.1
$region0: #{tpu_custom_call.1}
  #allocation0 [shape = 'u32[]', space=smem, size = 0x4, offset = 0x4, fixed_abs, tag = 'smem constant byte address 0x4 - core index']
  #allocation1 [shape = 'u32[144,128]{1,0:T(1,128)}', space=vmem, size = 0x12000, scoped, tag = 'internal scratch']
  %s0 = inlined_call_operand.hbm [shape: f32[300,256], index: 0, kind: input, shape index: {}]
  %s1 = inlined_call_operand.hbm [shape: bf16[256,128], index: 1, kind: input, shape index: {}]
  %s2 = inlined_call_operand.vmem [shape: f32[1,128], index: 2, kind: input, shape index: {}]
  %s3 = inlined_call_operand.hbm [shape: bf16[128,128], index: 3, kind: input, shape index: {}]
  %s4 = inlined_call_operand.vmem [shape: f32[1,128], index: 4, kind: input, shape index: {}]
  %s5 = inlined_call_operand.hbm [shape: f32[300,128], index: 5, kind: output, shape index: {}]
  %s6 = sld [smem:[#allocation0]]
  $region42: #{tpu_custom_call.1} parent=0
    _
  %s8 = ssub.s32 1, %s6
  %s9 = scalar_select 0, %s8, %s6
  $region1: #{tpu_custom_call.1} parent=0
    #allocation2 [shape = 'u8[311296]{0}', space=vmem, size = 0x4c000, scoped, tag = 'input window, operand 0, single buffered']
    #allocation3 [shape = 's32[1]{0}', space=sflag, size = 0x4, scoped, tag = 'scoped memory for tpu_custom_call.1']
    #allocation4 [shape = 's32[1]{0}', space=sflag, size = 0x4, scoped, tag = 'scoped memory for tpu_custom_call.1']
    #allocation5 [shape = 'u8[65536]{0}', space=vmem, size = 0x10000, scoped, tag = 'input window, operand 1, single buffered']
    #allocation6 [shape = 's32[1]{0}', space=sflag, size = 0x4, scoped, tag = 'scoped memory for tpu_custom_call.1']
    #allocation7 [shape = 'u8[32768]{0}', space=vmem, size = 0x8000, scoped, tag = 'input window, operand 3, single buffered']
    #allocation8 [shape = 'u8[155648]{0}', space=vmem, size = 0x26000, scoped, tag = 'output window, operand 0, single buffered']
    %10 = vsyncpa [#allocation3], 0
    %11 = vsyncpa [#allocation6], 0
    %12 = vsyncpa [#allocation4], 0
    // Predicated region
    $region2: #{tpu_custom_call.1} parent=1 // pred_check
      _
    $region3: #{tpu_custom_call.1} parent=1 // pred_check_branch
      %14 = sbr.rel (0) target = $region5
    $region4: #{tpu_custom_call.1} parent=1 // pred_region
      %s16 = ssub.s32 9728, 9728
      %17 = vsyncadd [#allocation3], %s16
      %s18 = sshll.u32 [#allocation2], 4
      %s19 = int_to_ptr.vmem [resolvable:$true] %s18
      %24 = dma.hbm_to_vmem [thread:$0]  %s0, 9728, %s19, [#allocation3], 256, 256, 16
    $region5: #{tpu_custom_call.1} parent=1 // pred_fallthru
      _
    // Predicated region
    $region6: #{tpu_custom_call.1} parent=1 // pred_check
      _
    $region7: #{tpu_custom_call.1} parent=1 // pred_check_branch
      %26 = sbr.rel (0) target = $region9
    $region8: #{tpu_custom_call.1} parent=1 // pred_region
      %s28 = ssub.s32 2048, 2048
      %29 = vsyncadd [#allocation6], %s28
      %s30 = sshll.u32 [#allocation5], 4
      %s31 = int_to_ptr.vmem [resolvable:$true] %s30
      %36 = dma.hbm_to_vmem [thread:$0]  %s1, 2048, %s31, [#allocation6], 64, 64, 4
    $region9: #{tpu_custom_call.1} parent=1 // pred_fallthru
      _
    // Predicated region
    $region10: #{tpu_custom_call.1} parent=1 // pred_check
      _
    $region11: #{tpu_custom_call.1} parent=1 // pred_check_branch
      %38 = sbr.rel (0) target = $region13
    $region12: #{tpu_custom_call.1} parent=1 // pred_region
      _
    $region13: #{tpu_custom_call.1} parent=1 // pred_fallthru
      _
    // Predicated region
    $region14: #{tpu_custom_call.1} parent=1 // pred_check
      _
    $region15: #{tpu_custom_call.1} parent=1 // pred_check_branch
      %40 = sbr.rel (0) target = $region17
    $region16: #{tpu_custom_call.1} parent=1 // pred_region
      %s42 = ssub.s32 1024, 1024
      %43 = vsyncadd [#allocation6], %s42
      %s44 = sshll.u32 [#allocation7], 4
      %s45 = int_to_ptr.vmem [resolvable:$true] %s44
      %50 = dma.hbm_to_vmem [thread:$0]  %s3, 1024, %s45, [#allocation6], 64, 64, 4
    $region17: #{tpu_custom_call.1} parent=1 // pred_fallthru
      _
    // Predicated region
    $region18: #{tpu_custom_call.1} parent=1 // pred_check
      _
    $region19: #{tpu_custom_call.1} parent=1 // pred_check_branch
      %52 = sbr.rel (0) target = $region21
    $region20: #{tpu_custom_call.1} parent=1 // pred_region
      _
    $region21: #{tpu_custom_call.1} parent=1 // pred_fallthru
      _
    // Predicated region
    $region22: #{tpu_custom_call.1} parent=1 // pred_check
      _
    $region23: #{tpu_custom_call.1} parent=1 // pred_check_branch
      %54 = sbr.rel (0) target = $region25
    $region24: #{tpu_custom_call.1} parent=1 // pred_region
      %55 = dma.done [#allocation3], 9728
    $region25: #{tpu_custom_call.1} parent=1 // pred_fallthru
      _
    // Predicated region
    $region26: #{tpu_custom_call.1} parent=1 // pred_check
      _
    $region27: #{tpu_custom_call.1} parent=1 // pred_check_branch
      %57 = sbr.rel (0) target = $region29
    $region28: #{tpu_custom_call.1} parent=1 // pred_region
      %58 = dma.done [#allocation6], 2048
    $region29: #{tpu_custom_call.1} parent=1 // pred_fallthru
      _
    // Predicated region
    $region30: #{tpu_custom_call.1} parent=1 // pred_check
      _
    $region31: #{tpu_custom_call.1} parent=1 // pred_check_branch
      %60 = sbr.rel (0) target = $region33
    $region32: #{tpu_custom_call.1} parent=1 // pred_region
      %61 = dma.done [#allocation6], 1024
    $region33: #{tpu_custom_call.1} parent=1 // pred_fallthru
      _
    %v63 = vld [vmem:[#allocation2] sm:$0xff]
    %v64 = vld [vmem:[#allocation2 + $0x8] sm:$0xff]
    %v65 = vld [vmem:[#allocation2 + $0x10] sm:$0xff]
    %v66 = vld [vmem:[#allocation2 + $0x18] sm:$0xff]
    %v67 = vld [vmem:[#allocation2 + $0x20] sm:$0xff]
    %v68 = vld [vmem:[#allocation2 + $0x28] sm:$0xff]
    %v69 = vld [vmem:[#allocation2 + $0x30] sm:$0xff]
    %v70 = vld [vmem:[#allocation2 + $0x38] sm:$0xff]
    %v71 = vld [vmem:[#allocation2 + $0x40] sm:$0xff]
    %v72 = vld [vmem:[#allocation2 + $0x48] sm:$0xff]
    %v73 = vld [vmem:[#allocation2 + $0x50] sm:$0xff]
    %v74 = vld [vmem:[#allocation2 + $0x58] sm:$0xff]
    %v75 = vld [vmem:[#allocation2 + $0x60] sm:$0xff]
    %v76 = vld [vmem:[#allocation2 + $0x68] sm:$0xff]
    %v77 = vld [vmem:[#allocation2 + $0x70] sm:$0xff]
    %v78 = vld [vmem:[#allocation2 + $0x78] sm:$0xff]
    %v79 = vld [vmem:[#allocation2 + $0x80] sm:$0xff]
    %v80 = vld [vmem:[#allocation2 + $0x88] sm:$0xff]
    %v81 = vld [vmem:[#allocation2 + $0x90] sm:$0xff]
    %v82 = vld [vmem:[#allocation2 + $0x98] sm:$0xff]
    %v83 = vld [vmem:[#allocation2 + $0xa0] sm:$0xff]
    %v84 = vld [vmem:[#allocation2 + $0xa8] sm:$0xff]
    %v85 = vld [vmem:[#allocation2 + $0xb0] sm:$0xff]
    %v86 = vld [vmem:[#allocation2 + $0xb8] sm:$0xff]
    %v87 = vld [vmem:[#allocation2 + $0xc0] sm:$0xff]
    %v88 = vld [vmem:[#allocation2 + $0xc8] sm:$0xff]
    %v89 = vld [vmem:[#allocation2 + $0xd0] sm:$0xff]
    %v90 = vld [vmem:[#allocation2 + $0xd8] sm:$0xff]
    %v91 = vld [vmem:[#allocation2 + $0xe0] sm:$0xff]
    %v92 = vld [vmem:[#allocation2 + $0xe8] sm:$0xff]
    %v93 = vld [vmem:[#allocation2 + $0xf0] sm:$0xff]
    %v94 = vld [vmem:[#allocation2 + $0xf8] sm:$0xff]
    %v95 = vld [vmem:[#allocation2 + $0x100] sm:$0xff]
    %v96 = vld [vmem:[#allocation2 + $0x108] sm:$0xff]
    %v97 = vld [vmem:[#allocation2 + $0x110] sm:$0xff]
    %v98 = vld [vmem:[#allocation2 + $0x118] sm:$0xff]
    %v99 = vld [vmem:[#allocation2 + $0x120] sm:$0xff]
    %v100 = vld [vmem:[#allocation2 + $0x128] sm:$0xff]
    %v101 = vld [vmem:[#allocation2 + $0x130] sm:$0xff]
    %v102 = vld [vmem:[#allocation2 + $0x138] sm:$0xff]
    %v103 = vld [vmem:[#allocation2 + $0x140] sm:$0xff]
    %v104 = vld [vmem:[#allocation2 + $0x148] sm:$0xff]
    %v105 = vld [vmem:[#allocation2 + $0x150] sm:$0xff]
    %v106 = vld [vmem:[#allocation2 + $0x158] sm:$0xff]
    %v107 = vld [vmem:[#allocation2 + $0x160] sm:$0xff]
    %v108 = vld [vmem:[#allocation2 + $0x168] sm:$0xff]
    %v109 = vld [vmem:[#allocation2 + $0x170] sm:$0xff]
    %v110 = vld [vmem:[#allocation2 + $0x178] sm:$0xff]
    %v111 = vld [vmem:[#allocation2 + $0x180] sm:$0xff]
    %v112 = vld [vmem:[#allocation2 + $0x188] sm:$0xff]
    %v113 = vld [vmem:[#allocation2 + $0x190] sm:$0xff]
    %v114 = vld [vmem:[#allocation2 + $0x198] sm:$0xff]
    %v115 = vld [vmem:[#allocation2 + $0x1a0] sm:$0xff]
    %v116 = vld [vmem:[#allocation2 + $0x1a8] sm:$0xff]
    %v117 = vld [vmem:[#allocation2 + $0x1b0] sm:$0xff]
    %v118 = vld [vmem:[#allocation2 + $0x1b8] sm:$0xff]
    %v119 = vld [vmem:[#allocation2 + $0x1c0] sm:$0xff]
    %v120 = vld [vmem:[#allocation2 + $0x1c8] sm:$0xff]
    %v121 = vld [vmem:[#allocation2 + $0x1d0] sm:$0xff]
    %v122 = vld [vmem:[#allocation2 + $0x1d8] sm:$0xff]
    %v123 = vld [vmem:[#allocation2 + $0x1e0] sm:$0xff]
    %v124 = vld [vmem:[#allocation2 + $0x1e8] sm:$0xff]
    %v125 = vld [vmem:[#allocation2 + $0x1f0] sm:$0xff]
    %v126 = vld [vmem:[#allocation2 + $0x1f8] sm:$0xff]
    %v127 = vld [vmem:[#allocation2 + $0x200] sm:$0xff]
    %v128 = vld [vmem:[#allocation2 + $0x208] sm:$0xff]
    %v129 = vld [vmem:[#allocation2 + $0x210] sm:$0xff]
    %v130 = vld [vmem:[#allocation2 + $0x218] sm:$0xff]
    %v131 = vld [vmem:[#allocation2 + $0x220] sm:$0xff]
    %v132 = vld [vmem:[#allocation2 + $0x228] sm:$0xff]
    %v133 = vld [vmem:[#allocation2 + $0x230] sm:$0xff]
    %v134 = vld [vmem:[#allocation2 + $0x238] sm:$0xff]
    %v135 = vld [vmem:[#allocation2 + $0x240] sm:$0xff]
    %v136 = vld [vmem:[#allocation2 + $0x248] sm:$0xff]
    %v137 = vld [vmem:[#allocation2 + $0x250] sm:$0xff]
    %v138 = vld [vmem:[#allocation2 + $0x258] sm:$0xff]
    %v139 = vpack.c.bf16 %v65, %v63
    %v140 = vpack.c.bf16 %v66, %v64
    %v141 = vpack.c.bf16 %v69, %v67
    %v142 = vpack.c.bf16 %v70, %v68
    %v143 = vpack.c.bf16 %v73, %v71
    %v144 = vpack.c.bf16 %v74, %v72
    %v145 = vpack.c.bf16 %v77, %v75
    %v146 = vpack.c.bf16 %v78, %v76
    %v147 = vpack.c.bf16 %v81, %v79
    %v148 = vpack.c.bf16 %v82, %v80
    %v149 = vpack.c.bf16 %v85, %v83
    %v150 = vpack.c.bf16 %v86, %v84
    %v151 = vpack.c.bf16 %v89, %v87
    %v152 = vpack.c.bf16 %v90, %v88
    %v153 = vpack.c.bf16 %v93, %v91
    %v154 = vpack.c.bf16 %v94, %v92
    %v155 = vpack.c.bf16 %v97, %v95
    %v156 = vpack.c.bf16 %v98, %v96
    %v157 = vpack.c.bf16 %v101, %v99
    %v158 = vpack.c.bf16 %v102, %v100
    %v159 = vpack.c.bf16 %v105, %v103
    %v160 = vpack.c.bf16 %v106, %v104
    %v161 = vpack.c.bf16 %v109, %v107
    %v162 = vpack.c.bf16 %v110, %v108
    %v163 = vpack.c.bf16 %v113, %v111
    %v164 = vpack.c.bf16 %v114, %v112
    %v165 = vpack.c.bf16 %v117, %v115
    %v166 = vpack.c.bf16 %v118, %v116
    %v167 = vpack.c.bf16 %v121, %v119
    %v168 = vpack.c.bf16 %v122, %v120
    %v169 = vpack.c.bf16 %v125, %v123
    %v170 = vpack.c.bf16 %v126, %v124
    %v171 = vpack.c.bf16 %v129, %v127
    %v172 = vpack.c.bf16 %v130, %v128
    %v173 = vpack.c.bf16 %v133, %v131
    %v174 = vpack.c.bf16 %v134, %v132
    %v175 = vpack.c.bf16 %v137, %v135
    %v176 = vpack.c.bf16 %v138, %v136
    %v177 = vld [vmem:[#allocation5] sm:$0xf]
    %v178 = vld [vmem:[#allocation5 + $0x4] sm:$0xf]
    %v179 = vld [vmem:[#allocation5 + $0x8] sm:$0xf]
    %v180 = vld [vmem:[#allocation5 + $0xc] sm:$0xf]
    %v181 = vld [vmem:[#allocation5 + $0x10] sm:$0xf]
    %v182 = vld [vmem:[#allocation5 + $0x14] sm:$0xf]
    %v183 = vld [vmem:[#allocation5 + $0x18] sm:$0xf]
    %v184 = vld [vmem:[#allocation5 + $0x1c] sm:$0xf]
    %v185 = vld [vmem:[#allocation5 + $0x20] sm:$0xf]
    %v186 = vld [vmem:[#allocation5 + $0x24] sm:$0xf]
    %v187 = vld [vmem:[#allocation5 + $0x28] sm:$0xf]
    %v188 = vld [vmem:[#allocation5 + $0x2c] sm:$0xf]
    %v189 = vld [vmem:[#allocation5 + $0x30] sm:$0xf]
    %v190 = vld [vmem:[#allocation5 + $0x34] sm:$0xf]
    %v191 = vld [vmem:[#allocation5 + $0x38] sm:$0xf]
    %v192 = vld [vmem:[#allocation5 + $0x3c] sm:$0xf]
    %v193 = vld [vmem:[#allocation5 + $0x40] sm:$0xf]
    %v194 = vld [vmem:[#allocation5 + $0x44] sm:$0xf]
    %v195 = vld [vmem:[#allocation5 + $0x48] sm:$0xf]
    %v196 = vld [vmem:[#allocation5 + $0x4c] sm:$0xf]
    %v197 = vld [vmem:[#allocation5 + $0x50] sm:$0xf]
    %v198 = vld [vmem:[#allocation5 + $0x54] sm:$0xf]
    %v199 = vld [vmem:[#allocation5 + $0x58] sm:$0xf]
    %v200 = vld [vmem:[#allocation5 + $0x5c] sm:$0xf]
    %v201 = vld [vmem:[#allocation5 + $0x60] sm:$0xf]
    %v202 = vld [vmem:[#allocation5 + $0x64] sm:$0xf]
    %v203 = vld [vmem:[#allocation5 + $0x68] sm:$0xf]
    %v204 = vld [vmem:[#allocation5 + $0x6c] sm:$0xf]
    %v205 = vld [vmem:[#allocation5 + $0x70] sm:$0xf]
    %v206 = vld [vmem:[#allocation5 + $0x74] sm:$0xf]
    %v207 = vld [vmem:[#allocation5 + $0x78] sm:$0xf]
    %v208 = vld [vmem:[#allocation5 + $0x7c] sm:$0xf]
    %v209 = vld [vmem:[%s2] sm:$0x1]
    %v211 = vlaneseq
    %v212 = vshrl.u32 %v211, 7
    %v213 = vsub.s32 0, %v212
    %v214 = vrot.slane %v209, %v213
    %v248 = vunpack.c.l.b16 %v177
    %v249 = vunpack.c.l.b16 %v178
    %v250 = vunpack.c.l.b16 %v179
    %v251 = vunpack.c.l.b16 %v180
    %v252 = vunpack.c.l.b16 %v181
    %v253 = vunpack.c.l.b16 %v182
    %v254 = vunpack.c.l.b16 %v183
    %v255 = vunpack.c.l.b16 %v184
    %v256 = vunpack.c.l.b16 %v185
    %v257 = vunpack.c.l.b16 %v186
    %v258 = vunpack.c.l.b16 %v187
    %v259 = vunpack.c.l.b16 %v188
    %v260 = vunpack.c.l.b16 %v189
    %v261 = vunpack.c.l.b16 %v190
    %v262 = vunpack.c.l.b16 %v191
    %v263 = vunpack.c.l.b16 %v192
    %v264 = vunpack.c.l.b16 %v193
    %v265 = vunpack.c.l.b16 %v194
    %v266 = vunpack.c.l.b16 %v195
    %v267 = vunpack.c.l.b16 %v196
    %v268 = vunpack.c.l.b16 %v197
    %v269 = vunpack.c.l.b16 %v198
    %v270 = vunpack.c.l.b16 %v199
    %v271 = vunpack.c.l.b16 %v200
    %v272 = vunpack.c.l.b16 %v201
    %v273 = vunpack.c.l.b16 %v202
    %v274 = vunpack.c.l.b16 %v203
    %v275 = vunpack.c.l.b16 %v204
    %v276 = vunpack.c.l.b16 %v205
    %v277 = vunpack.c.l.b16 %v206
    %v278 = vunpack.c.l.b16 %v207
    %v279 = vunpack.c.l.b16 %v208
    %v280 = vpack.c.b16 %v249, %v248
    %v281 = vpack.c.b16 %v251, %v250
    %v282 = vpack.c.b16 %v253, %v252
    %v283 = vpack.c.b16 %v255, %v254
    %v284 = vpack.c.b16 %v257, %v256
    %v285 = vpack.c.b16 %v259, %v258
    %v286 = vpack.c.b16 %v261, %v260
    %v287 = vpack.c.b16 %v263, %v262
    %v288 = vpack.c.b16 %v265, %v264
    %v289 = vpack.c.b16 %v267, %v266
    %v290 = vpack.c.b16 %v269, %v268
    %v291 = vpack.c.b16 %v271, %v270
    %v292 = vpack.c.b16 %v273, %v272
    %v293 = vpack.c.b16 %v275, %v274
    %v294 = vpack.c.b16 %v277, %v276
    %v295 = vpack.c.b16 %v279, %v278
    %312 = vmatprep.subr.bf16.mxu0 0
    %313 = vmatpush1.bf16.msra.mxu0 %v287
    %314 = vmatprep.subr.bf16.mxu0 0
    %315 = vmatpush1.bf16.msra.mxu0 %v286
    %316 = vmatprep.subr.bf16.mxu0 0
    %317 = vmatpush1.bf16.msra.mxu0 %v285
    %318 = vmatprep.subr.bf16.mxu0 0
    %319 = vmatpush1.bf16.msra.mxu0 %v284
    %320 = vmatprep.subr.bf16.mxu0 0
    %321 = vmatpush1.bf16.msra.mxu0 %v283
    %322 = vmatprep.subr.bf16.mxu0 0
    %323 = vmatpush1.bf16.msra.mxu0 %v282
    %324 = vmatprep.subr.bf16.mxu0 0
    %325 = vmatpush1.bf16.msra.mxu0 %v281
    %326 = vmatprep.subr.bf16.mxu0 0
    %327 = vmatpush1.bf16.msra.mxu0 %v280
    %328 = vmatprep.subr.bf16.mxu0 0
    %329 = vmatpush2.bf16.msra.mxu0 %v295
    %330 = vmatprep.subr.bf16.mxu0 0
    %331 = vmatpush2.bf16.msra.mxu0 %v294
    %332 = vmatprep.subr.bf16.mxu0 0
    %333 = vmatpush2.bf16.msra.mxu0 %v293
    %334 = vmatprep.subr.bf16.mxu0 0
    %335 = vmatpush2.bf16.msra.mxu0 %v292
    %336 = vmatprep.subr.bf16.mxu0 0
    %337 = vmatpush2.bf16.msra.mxu0 %v291
    %338 = vmatprep.subr.bf16.mxu0 0
    %339 = vmatpush2.bf16.msra.mxu0 %v290
    %340 = vmatprep.subr.bf16.mxu0 0
    %341 = vmatpush2.bf16.msra.mxu0 %v289
    %342 = vmatprep.subr.bf16.mxu0 0
    %343 = vmatpush2.bf16.msra.mxu0 %v288
    %344 = vmatprep.mubr.bf16.mxu0 %v140
    %345 = vmatmul.mubr.bf16.gmra.mxu0 %v139
    %v346 = vpop.f32.mrf.mxu0
    %v347 = vadd.f32 %v214, %v346
    %v348 = vpop.f32.mrf.mxu0
    %v349 = vpop.f32.mrf.mxu0
    %v350 = vadd.f32 %v214, %v349
    %v351 = vpop.f32.mrf.mxu0
    %352 = vmatprep.mubr.bf16.mxu0 %v142
    %353 = vmatmul.mubr.bf16.gmra.mxu0 %v141
    %v354 = vpop.f32.mrf.mxu0
    %v355 = vadd.f32 %v214, %v354
    %v356 = vpop.f32.mrf.mxu0
    %v357 = vpop.f32.mrf.mxu0
    %v358 = vadd.f32 %v214, %v357
    %v359 = vpop.f32.mrf.mxu0
    %360 = vmatprep.mubr.bf16.mxu0 %v144
    %361 = vmatmul.mubr.bf16.gmra.mxu0 %v143
    %v362 = vpop.f32.mrf.mxu0
    %v363 = vadd.f32 %v214, %v362
    %v364 = vpop.f32.mrf.mxu0
    %v365 = vpop.f32.mrf.mxu0
    %v366 = vadd.f32 %v214, %v365
    %v367 = vpop.f32.mrf.mxu0
    %368 = vmatprep.mubr.bf16.mxu0 %v146
    %369 = vmatmul.mubr.bf16.gmra.mxu0 %v145
    %v370 = vpop.f32.mrf.mxu0
    %v371 = vadd.f32 %v214, %v370
    %v372 = vpop.f32.mrf.mxu0
    %v373 = vpop.f32.mrf.mxu0
    %v374 = vadd.f32 %v214, %v373
    %v375 = vpop.f32.mrf.mxu0
    %376 = vmatprep.mubr.bf16.mxu0 %v148
    %377 = vmatmul.mubr.bf16.gmra.mxu0 %v147
    %v378 = vpop.f32.mrf.mxu0
    %v379 = vadd.f32 %v214, %v378
    %v380 = vpop.f32.mrf.mxu0
    %v381 = vpop.f32.mrf.mxu0
    %v382 = vadd.f32 %v214, %v381
    %v383 = vpop.f32.mrf.mxu0
    %384 = vmatprep.mubr.bf16.mxu0 %v150
    %385 = vmatmul.mubr.bf16.gmra.mxu0 %v149
    %v386 = vpop.f32.mrf.mxu0
    %v387 = vadd.f32 %v214, %v386
    %v388 = vpop.f32.mrf.mxu0
    %v389 = vpop.f32.mrf.mxu0
    %v390 = vadd.f32 %v214, %v389
    %v391 = vpop.f32.mrf.mxu0
    %392 = vmatprep.mubr.bf16.mxu0 %v152
    %393 = vmatmul.mubr.bf16.gmra.mxu0 %v151
    %v394 = vpop.f32.mrf.mxu0
    %v395 = vadd.f32 %v214, %v394
    %v396 = vpop.f32.mrf.mxu0
    %v397 = vpop.f32.mrf.mxu0
    %v398 = vadd.f32 %v214, %v397
    %v399 = vpop.f32.mrf.mxu0
    %400 = vmatprep.mubr.bf16.mxu0 %v154
    %401 = vmatmul.mubr.bf16.gmra.mxu0 %v153
    %v402 = vpop.f32.mrf.mxu0
    %v403 = vadd.f32 %v214, %v402
    %v404 = vpop.f32.mrf.mxu0
    %v405 = vpop.f32.mrf.mxu0
    %v406 = vadd.f32 %v214, %v405
    %v407 = vpop.f32.mrf.mxu0
    %408 = vmatprep.mubr.bf16.mxu0 %v156
    %409 = vmatmul.mubr.bf16.gmra.mxu0 %v155
    %v410 = vpop.f32.mrf.mxu0
    %v411 = vadd.f32 %v214, %v410
    %v412 = vpop.f32.mrf.mxu0
    %v413 = vpop.f32.mrf.mxu0
    %v414 = vadd.f32 %v214, %v413
    %v415 = vpop.f32.mrf.mxu0
    %416 = vmatprep.mubr.bf16.mxu0 %v158
    %417 = vmatmul.mubr.bf16.gmra.mxu0 %v157
    %v418 = vpop.f32.mrf.mxu0
    %v419 = vadd.f32 %v214, %v418
    %v420 = vpop.f32.mrf.mxu0
    %v421 = vpop.f32.mrf.mxu0
    %v422 = vadd.f32 %v214, %v421
    %v423 = vpop.f32.mrf.mxu0
    %424 = vmatprep.mubr.bf16.mxu0 %v160
    %425 = vmatmul.mubr.bf16.gmra.mxu0 %v159
    %v426 = vpop.f32.mrf.mxu0
    %v427 = vadd.f32 %v214, %v426
    %v428 = vpop.f32.mrf.mxu0
    %v429 = vpop.f32.mrf.mxu0
    %v430 = vadd.f32 %v214, %v429
    %v431 = vpop.f32.mrf.mxu0
    %432 = vmatprep.mubr.bf16.mxu0 %v162
    %433 = vmatmul.mubr.bf16.gmra.mxu0 %v161
    %v434 = vpop.f32.mrf.mxu0
    %v435 = vadd.f32 %v214, %v434
    %v436 = vpop.f32.mrf.mxu0
    %v437 = vpop.f32.mrf.mxu0
    %v438 = vadd.f32 %v214, %v437
    %v439 = vpop.f32.mrf.mxu0
    %440 = vmatprep.mubr.bf16.mxu0 %v164
    %441 = vmatmul.mubr.bf16.gmra.mxu0 %v163
    %v442 = vpop.f32.mrf.mxu0
    %v443 = vadd.f32 %v214, %v442
    %v444 = vpop.f32.mrf.mxu0
    %v445 = vpop.f32.mrf.mxu0
    %v446 = vadd.f32 %v214, %v445
    %v447 = vpop.f32.mrf.mxu0
    %448 = vmatprep.mubr.bf16.mxu0 %v166
    %449 = vmatmul.mubr.bf16.gmra.mxu0 %v165
    %v450 = vpop.f32.mrf.mxu0
    %v451 = vadd.f32 %v214, %v450
    %v452 = vpop.f32.mrf.mxu0
    %v453 = vpop.f32.mrf.mxu0
    %v454 = vadd.f32 %v214, %v453
    %v455 = vpop.f32.mrf.mxu0
    %456 = vmatprep.mubr.bf16.mxu0 %v168
    %457 = vmatmul.mubr.bf16.gmra.mxu0 %v167
    %v458 = vpop.f32.mrf.mxu0
    %v459 = vadd.f32 %v214, %v458
    %v460 = vpop.f32.mrf.mxu0
    %v461 = vpop.f32.mrf.mxu0
    %v462 = vadd.f32 %v214, %v461
    %v463 = vpop.f32.mrf.mxu0
    %464 = vmatprep.mubr.bf16.mxu0 %v170
    %465 = vmatmul.mubr.bf16.gmra.mxu0 %v169
    %v466 = vpop.f32.mrf.mxu0
    %v467 = vadd.f32 %v214, %v466
    %v468 = vpop.f32.mrf.mxu0
    %v469 = vpop.f32.mrf.mxu0
    %v470 = vadd.f32 %v214, %v469
    %v471 = vpop.f32.mrf.mxu0
    %472 = vmatprep.mubr.bf16.mxu0 %v172
    %473 = vmatmul.mubr.bf16.gmra.mxu0 %v171
    %v474 = vpop.f32.mrf.mxu0
    %v475 = vadd.f32 %v214, %v474
    %v476 = vpop.f32.mrf.mxu0
    %v477 = vpop.f32.mrf.mxu0
    %v478 = vadd.f32 %v214, %v477
    %v479 = vpop.f32.mrf.mxu0
    %480 = vmatprep.mubr.bf16.mxu0 %v174
    %481 = vmatmul.mubr.bf16.gmra.mxu0 %v173
    %v482 = vpop.f32.mrf.mxu0
    %v483 = vadd.f32 %v214, %v482
    %v484 = vpop.f32.mrf.mxu0
    %v485 = vpop.f32.mrf.mxu0
    %v486 = vadd.f32 %v214, %v485
    %v487 = vpop.f32.mrf.mxu0
    %488 = vmatprep.mubr.bf16.mxu0 %v176
    %489 = vmatmul.mubr.bf16.gmra.mxu0 %v175
    %v490 = vpop.f32.mrf.mxu0
    %v491 = vadd.f32 %v214, %v490
    %v492 = vpop.f32.mrf.mxu0
    %v493 = vpop.f32.mrf.mxu0
    %v494 = vadd.f32 %v214, %v493
    %v495 = vpop.f32.mrf.mxu0
    %496 = vdwg.mxu0
    %v497 = vmax.f32 %v347, 0.0
    %v498 = vmax.f32 %v350, 0.0
    %v499 = vmax.f32 %v355, 0.0
    %v500 = vmax.f32 %v358, 0.0
    %v501 = vmax.f32 %v363, 0.0
    %v502 = vmax.f32 %v366, 0.0
    %v503 = vmax.f32 %v371, 0.0
    %v504 = vmax.f32 %v374, 0.0
    %v505 = vmax.f32 %v379, 0.0
    %v506 = vmax.f32 %v382, 0.0
    %v507 = vmax.f32 %v387, 0.0
    %v508 = vmax.f32 %v390, 0.0
    %v509 = vmax.f32 %v395, 0.0
    %v510 = vmax.f32 %v398, 0.0
    %v511 = vmax.f32 %v403, 0.0
    %v512 = vmax.f32 %v406, 0.0
    %v513 = vmax.f32 %v411, 0.0
    %v514 = vmax.f32 %v414, 0.0
    %v515 = vmax.f32 %v419, 0.0
    %v516 = vmax.f32 %v422, 0.0
    %v517 = vmax.f32 %v427, 0.0
    %v518 = vmax.f32 %v430, 0.0
    %v519 = vmax.f32 %v435, 0.0
    %v520 = vmax.f32 %v438, 0.0
    %v521 = vmax.f32 %v443, 0.0
    %v522 = vmax.f32 %v446, 0.0
    %v523 = vmax.f32 %v451, 0.0
    %v524 = vmax.f32 %v454, 0.0
    %v525 = vmax.f32 %v459, 0.0
    %v526 = vmax.f32 %v462, 0.0
    %v527 = vmax.f32 %v467, 0.0
    %v528 = vmax.f32 %v470, 0.0
    %v529 = vmax.f32 %v475, 0.0
    %v530 = vmax.f32 %v478, 0.0
    %v531 = vmax.f32 %v483, 0.0
    %v532 = vmax.f32 %v486, 0.0
    %v533 = vmax.f32 %v491, 0.0
    %v534 = vmax.f32 %v494, 0.0
    %v535 = vpack.c.bf16 %v498, %v497
    %v536 = vpack.c.bf16 %v500, %v499
    %v537 = vpack.c.bf16 %v502, %v501
    %v538 = vpack.c.bf16 %v504, %v503
    %v539 = vpack.c.bf16 %v506, %v505
    %v540 = vpack.c.bf16 %v508, %v507
    %v541 = vpack.c.bf16 %v510, %v509
    %v542 = vpack.c.bf16 %v512, %v511
    %v543 = vpack.c.bf16 %v514, %v513
    %v544 = vpack.c.bf16 %v516, %v515
    %v545 = vpack.c.bf16 %v518, %v517
    %v546 = vpack.c.bf16 %v520, %v519
    %v547 = vpack.c.bf16 %v522, %v521
    %v548 = vpack.c.bf16 %v524, %v523
    %v549 = vpack.c.bf16 %v526, %v525
    %v550 = vpack.c.bf16 %v528, %v527
    %v551 = vpack.c.bf16 %v530, %v529
    %v552 = vpack.c.bf16 %v532, %v531
    %v553 = vpack.c.bf16 %v534, %v533
    %v554 = vld [vmem:[#allocation7] sm:$0xf]
    %v555 = vld [vmem:[#allocation7 + $0x4] sm:$0xf]
    %v556 = vld [vmem:[#allocation7 + $0x8] sm:$0xf]
    %v557 = vld [vmem:[#allocation7 + $0xc] sm:$0xf]
    %v558 = vld [vmem:[#allocation7 + $0x10] sm:$0xf]
    %v559 = vld [vmem:[#allocation7 + $0x14] sm:$0xf]
    %v560 = vld [vmem:[#allocation7 + $0x18] sm:$0xf]
    %v561 = vld [vmem:[#allocation7 + $0x1c] sm:$0xf]
    %v562 = vld [vmem:[#allocation7 + $0x20] sm:$0xf]
    %v563 = vld [vmem:[#allocation7 + $0x24] sm:$0xf]
    %v564 = vld [vmem:[#allocation7 + $0x28] sm:$0xf]
    %v565 = vld [vmem:[#allocation7 + $0x2c] sm:$0xf]
    %v566 = vld [vmem:[#allocation7 + $0x30] sm:$0xf]
    %v567 = vld [vmem:[#allocation7 + $0x34] sm:$0xf]
    %v568 = vld [vmem:[#allocation7 + $0x38] sm:$0xf]
    %v569 = vld [vmem:[#allocation7 + $0x3c] sm:$0xf]
    %v570 = vld [vmem:[%s4] sm:$0x1]
    %v572 = vlaneseq
    %v573 = vshrl.u32 %v572, 7
    %v574 = vsub.s32 0, %v573
    %v575 = vrot.slane %v570, %v574
    %v593 = vunpack.c.l.b16 %v554
    %v594 = vunpack.c.l.b16 %v555
    %v595 = vunpack.c.l.b16 %v556
    %v596 = vunpack.c.l.b16 %v557
    %v597 = vunpack.c.l.b16 %v558
    %v598 = vunpack.c.l.b16 %v559
    %v599 = vunpack.c.l.b16 %v560
    %v600 = vunpack.c.l.b16 %v561
    %v601 = vunpack.c.l.b16 %v562
    %v602 = vunpack.c.l.b16 %v563
    %v603 = vunpack.c.l.b16 %v564
    %v604 = vunpack.c.l.b16 %v565
    %v605 = vunpack.c.l.b16 %v566
    %v606 = vunpack.c.l.b16 %v567
    %v607 = vunpack.c.l.b16 %v568
    %v608 = vunpack.c.l.b16 %v569
    %v609 = vpack.c.b16 %v594, %v593
    %v610 = vpack.c.b16 %v596, %v595
    %v611 = vpack.c.b16 %v598, %v597
    %v612 = vpack.c.b16 %v600, %v599
    %v613 = vpack.c.b16 %v602, %v601
    %v614 = vpack.c.b16 %v604, %v603
    %v615 = vpack.c.b16 %v606, %v605
    %v616 = vpack.c.b16 %v608, %v607
    %625 = vmatprep.subr.bf16.mxu0 0
    %626 = vmatpush1.bf16.msra.mxu0 %v616
    %627 = vmatprep.subr.bf16.mxu0 0
    %628 = vmatpush1.bf16.msra.mxu0 %v615
    %629 = vmatprep.subr.bf16.mxu0 0
    %630 = vmatpush1.bf16.msra.mxu0 %v614
    %631 = vmatprep.subr.bf16.mxu0 0
    %632 = vmatpush1.bf16.msra.mxu0 %v613
    %633 = vmatprep.subr.bf16.mxu0 0
    %634 = vmatpush1.bf16.msra.mxu0 %v612
    %635 = vmatprep.subr.bf16.mxu0 0
    %636 = vmatpush1.bf16.msra.mxu0 %v611
    %637 = vmatprep.subr.bf16.mxu0 0
    %638 = vmatpush1.bf16.msra.mxu0 %v610
    %639 = vmatprep.subr.bf16.mxu0 0
    %640 = vmatpush1.bf16.msra.mxu0 %v609
    %641 = vmatprep.subr.bf16.mxu0 0
    %642 = vmatpush2.bf16.msra.mxu0 0
    %643 = vmatprep.subr.bf16.mxu0 0
    %644 = vmatpush2.bf16.msra.mxu0 0
    %645 = vmatprep.subr.bf16.mxu0 0
    %646 = vmatpush2.bf16.msra.mxu0 0
    %647 = vmatprep.subr.bf16.mxu0 0
    %648 = vmatpush2.bf16.msra.mxu0 0
    %649 = vmatprep.subr.bf16.mxu0 0
    %650 = vmatpush2.bf16.msra.mxu0 0
    %651 = vmatprep.subr.bf16.mxu0 0
    %652 = vmatpush2.bf16.msra.mxu0 0
    %653 = vmatprep.subr.bf16.mxu0 0
    %654 = vmatpush2.bf16.msra.mxu0 0
    %655 = vmatprep.subr.bf16.mxu0 0
    %656 = vmatpush2.bf16.msra.mxu0 0
    %657 = vmatprep.mubr.bf16.mxu0 0
    %658 = vmatmul.mubr.bf16.gmra.mxu0 %v535
    %v659 = vpop.f32.mrf.mxu0
    %v660 = vadd.f32 %v575, %v659
    %v661 = vpop.f32.mrf.mxu0
    %v662 = vpop.f32.mrf.mxu0
    %v663 = vadd.f32 %v575, %v662
    %v664 = vpop.f32.mrf.mxu0
    %665 = vmatprep.mubr.bf16.mxu0 0
    %666 = vmatmul.mubr.bf16.gmra.mxu0 %v536
    %v667 = vpop.f32.mrf.mxu0
    %v668 = vadd.f32 %v575, %v667
    %v669 = vpop.f32.mrf.mxu0
    %v670 = vpop.f32.mrf.mxu0
    %v671 = vadd.f32 %v575, %v670
    %v672 = vpop.f32.mrf.mxu0
    %673 = vmatprep.mubr.bf16.mxu0 0
    %674 = vmatmul.mubr.bf16.gmra.mxu0 %v537
    %v675 = vpop.f32.mrf.mxu0
    %v676 = vadd.f32 %v575, %v675
    %v677 = vpop.f32.mrf.mxu0
    %v678 = vpop.f32.mrf.mxu0
    %v679 = vadd.f32 %v575, %v678
    %v680 = vpop.f32.mrf.mxu0
    %681 = vmatprep.mubr.bf16.mxu0 0
    %682 = vmatmul.mubr.bf16.gmra.mxu0 %v538
    %v683 = vpop.f32.mrf.mxu0
    %v684 = vadd.f32 %v575, %v683
    %v685 = vpop.f32.mrf.mxu0
    %v686 = vpop.f32.mrf.mxu0
    %v687 = vadd.f32 %v575, %v686
    %v688 = vpop.f32.mrf.mxu0
    %689 = vmatprep.mubr.bf16.mxu0 0
    %690 = vmatmul.mubr.bf16.gmra.mxu0 %v539
    %v691 = vpop.f32.mrf.mxu0
    %v692 = vadd.f32 %v575, %v691
    %v693 = vpop.f32.mrf.mxu0
    %v694 = vpop.f32.mrf.mxu0
    %v695 = vadd.f32 %v575, %v694
    %v696 = vpop.f32.mrf.mxu0
    %697 = vmatprep.mubr.bf16.mxu0 0
    %698 = vmatmul.mubr.bf16.gmra.mxu0 %v540
    %v699 = vpop.f32.mrf.mxu0
    %v700 = vadd.f32 %v575, %v699
    %v701 = vpop.f32.mrf.mxu0
    %v702 = vpop.f32.mrf.mxu0
    %v703 = vadd.f32 %v575, %v702
    %v704 = vpop.f32.mrf.mxu0
    %705 = vmatprep.mubr.bf16.mxu0 0
    %706 = vmatmul.mubr.bf16.gmra.mxu0 %v541
    %v707 = vpop.f32.mrf.mxu0
    %v708 = vadd.f32 %v575, %v707
    %v709 = vpop.f32.mrf.mxu0
    %v710 = vpop.f32.mrf.mxu0
    %v711 = vadd.f32 %v575, %v710
    %v712 = vpop.f32.mrf.mxu0
    %713 = vmatprep.mubr.bf16.mxu0 0
    %714 = vmatmul.mubr.bf16.gmra.mxu0 %v542
    %v715 = vpop.f32.mrf.mxu0
    %v716 = vadd.f32 %v575, %v715
    %v717 = vpop.f32.mrf.mxu0
    %v718 = vpop.f32.mrf.mxu0
    %v719 = vadd.f32 %v575, %v718
    %v720 = vpop.f32.mrf.mxu0
    %721 = vmatprep.mubr.bf16.mxu0 0
    %722 = vmatmul.mubr.bf16.gmra.mxu0 %v543
    %v723 = vpop.f32.mrf.mxu0
    %v724 = vadd.f32 %v575, %v723
    %v725 = vpop.f32.mrf.mxu0
    %v726 = vpop.f32.mrf.mxu0
    %v727 = vadd.f32 %v575, %v726
    %v728 = vpop.f32.mrf.mxu0
    %729 = vmatprep.mubr.bf16.mxu0 0
    %730 = vmatmul.mubr.bf16.gmra.mxu0 %v544
    %v731 = vpop.f32.mrf.mxu0
    %v732 = vadd.f32 %v575, %v731
    %v733 = vpop.f32.mrf.mxu0
    %v734 = vpop.f32.mrf.mxu0
    %v735 = vadd.f32 %v575, %v734
    %v736 = vpop.f32.mrf.mxu0
    %737 = vmatprep.mubr.bf16.mxu0 0
    %738 = vmatmul.mubr.bf16.gmra.mxu0 %v545
    %v739 = vpop.f32.mrf.mxu0
    %v740 = vadd.f32 %v575, %v739
    %v741 = vpop.f32.mrf.mxu0
    %v742 = vpop.f32.mrf.mxu0
    %v743 = vadd.f32 %v575, %v742
    %v744 = vpop.f32.mrf.mxu0
    %745 = vmatprep.mubr.bf16.mxu0 0
    %746 = vmatmul.mubr.bf16.gmra.mxu0 %v546
    %v747 = vpop.f32.mrf.mxu0
    %v748 = vadd.f32 %v575, %v747
    %v749 = vpop.f32.mrf.mxu0
    %v750 = vpop.f32.mrf.mxu0
    %v751 = vadd.f32 %v575, %v750
    %v752 = vpop.f32.mrf.mxu0
    %753 = vmatprep.mubr.bf16.mxu0 0
    %754 = vmatmul.mubr.bf16.gmra.mxu0 %v547
    %v755 = vpop.f32.mrf.mxu0
    %v756 = vadd.f32 %v575, %v755
    %v757 = vpop.f32.mrf.mxu0
    %v758 = vpop.f32.mrf.mxu0
    %v759 = vadd.f32 %v575, %v758
    %v760 = vpop.f32.mrf.mxu0
    %761 = vmatprep.mubr.bf16.mxu0 0
    %762 = vmatmul.mubr.bf16.gmra.mxu0 %v548
    %v763 = vpop.f32.mrf.mxu0
    %v764 = vadd.f32 %v575, %v763
    %v765 = vpop.f32.mrf.mxu0
    %v766 = vpop.f32.mrf.mxu0
    %v767 = vadd.f32 %v575, %v766
    %v768 = vpop.f32.mrf.mxu0
    %769 = vmatprep.mubr.bf16.mxu0 0
    %770 = vmatmul.mubr.bf16.gmra.mxu0 %v549
    %v771 = vpop.f32.mrf.mxu0
    %v772 = vadd.f32 %v575, %v771
    %v773 = vpop.f32.mrf.mxu0
    %v774 = vpop.f32.mrf.mxu0
    %v775 = vadd.f32 %v575, %v774
    %v776 = vpop.f32.mrf.mxu0
    %777 = vmatprep.mubr.bf16.mxu0 0
    %778 = vmatmul.mubr.bf16.gmra.mxu0 %v550
    %v779 = vpop.f32.mrf.mxu0
    %v780 = vadd.f32 %v575, %v779
    %v781 = vpop.f32.mrf.mxu0
    %v782 = vpop.f32.mrf.mxu0
    %v783 = vadd.f32 %v575, %v782
    %v784 = vpop.f32.mrf.mxu0
    %785 = vmatprep.mubr.bf16.mxu0 0
    %786 = vmatmul.mubr.bf16.gmra.mxu0 %v551
    %v787 = vpop.f32.mrf.mxu0
    %v788 = vadd.f32 %v575, %v787
    %v789 = vpop.f32.mrf.mxu0
    %v790 = vpop.f32.mrf.mxu0
    %v791 = vadd.f32 %v575, %v790
    %v792 = vpop.f32.mrf.mxu0
    %793 = vmatprep.mubr.bf16.mxu0 0
    %794 = vmatmul.mubr.bf16.gmra.mxu0 %v552
    %v795 = vpop.f32.mrf.mxu0
    %v796 = vadd.f32 %v575, %v795
    %v797 = vpop.f32.mrf.mxu0
    %v798 = vpop.f32.mrf.mxu0
    %v799 = vadd.f32 %v575, %v798
    %v800 = vpop.f32.mrf.mxu0
    %801 = vmatprep.mubr.bf16.mxu0 0
    %802 = vmatmul.mubr.bf16.gmra.mxu0 %v553
    %v803 = vpop.f32.mrf.mxu0
    %v804 = vadd.f32 %v575, %v803
    %v805 = vpop.f32.mrf.mxu0
    %v806 = vpop.f32.mrf.mxu0
    %v807 = vadd.f32 %v575, %v806
    %v808 = vpop.f32.mrf.mxu0
    %809 = vdwg.mxu0
    %810 = vst [vmem:[#allocation8] sm:$0xff] %v660
    %811 = vst [vmem:[#allocation8 + $0x8] sm:$0xff] %v663
    %812 = vst [vmem:[#allocation8 + $0x10] sm:$0xff] %v668
    %813 = vst [vmem:[#allocation8 + $0x18] sm:$0xff] %v671
    %814 = vst [vmem:[#allocation8 + $0x20] sm:$0xff] %v676
    %815 = vst [vmem:[#allocation8 + $0x28] sm:$0xff] %v679
    %816 = vst [vmem:[#allocation8 + $0x30] sm:$0xff] %v684
    %817 = vst [vmem:[#allocation8 + $0x38] sm:$0xff] %v687
    %818 = vst [vmem:[#allocation8 + $0x40] sm:$0xff] %v692
    %819 = vst [vmem:[#allocation8 + $0x48] sm:$0xff] %v695
    %820 = vst [vmem:[#allocation8 + $0x50] sm:$0xff] %v700
    %821 = vst [vmem:[#allocation8 + $0x58] sm:$0xff] %v703
    %822 = vst [vmem:[#allocation8 + $0x60] sm:$0xff] %v708
    %823 = vst [vmem:[#allocation8 + $0x68] sm:$0xff] %v711
    %824 = vst [vmem:[#allocation8 + $0x70] sm:$0xff] %v716
    %825 = vst [vmem:[#allocation8 + $0x78] sm:$0xff] %v719
    %826 = vst [vmem:[#allocation8 + $0x80] sm:$0xff] %v724
    %827 = vst [vmem:[#allocation8 + $0x88] sm:$0xff] %v727
    %828 = vst [vmem:[#allocation8 + $0x90] sm:$0xff] %v732
    %829 = vst [vmem:[#allocation8 + $0x98] sm:$0xff] %v735
    %830 = vst [vmem:[#allocation8 + $0xa0] sm:$0xff] %v740
    %831 = vst [vmem:[#allocation8 + $0xa8] sm:$0xff] %v743
    %832 = vst [vmem:[#allocation8 + $0xb0] sm:$0xff] %v748
    %833 = vst [vmem:[#allocation8 + $0xb8] sm:$0xff] %v751
    %834 = vst [vmem:[#allocation8 + $0xc0] sm:$0xff] %v756
    %835 = vst [vmem:[#allocation8 + $0xc8] sm:$0xff] %v759
    %836 = vst [vmem:[#allocation8 + $0xd0] sm:$0xff] %v764
    %837 = vst [vmem:[#allocation8 + $0xd8] sm:$0xff] %v767
    %838 = vst [vmem:[#allocation8 + $0xe0] sm:$0xff] %v772
    %839 = vst [vmem:[#allocation8 + $0xe8] sm:$0xff] %v775
    %840 = vst [vmem:[#allocation8 + $0xf0] sm:$0xff] %v780
    %841 = vst [vmem:[#allocation8 + $0xf8] sm:$0xff] %v783
    %842 = vst [vmem:[#allocation8 + $0x100] sm:$0xff] %v788
    %843 = vst [vmem:[#allocation8 + $0x108] sm:$0xff] %v791
    %844 = vst [vmem:[#allocation8 + $0x110] sm:$0xff] %v796
    %845 = vst [vmem:[#allocation8 + $0x118] sm:$0xff] %v799
    %846 = vst [vmem:[#allocation8 + $0x120] sm:$0xff] %v804
    %847 = vst [vmem:[#allocation8 + $0x128] sm:$0xff] %v807
    // Predicated region
    $region34: #{tpu_custom_call.1} parent=1 // pred_check
      _
    $region35: #{tpu_custom_call.1} parent=1 // pred_check_branch
      %849 = sbr.rel (0) target = $region37
    $region36: #{tpu_custom_call.1} parent=1 // pred_region
      %s851 = ssub.s32 4864, 4864
      %852 = vsyncadd [#allocation4], %s851
      %s853 = sshll.u32 [#allocation8], 4
      %s854 = int_to_ptr.vmem [resolvable:$true] %s853
      %859 = dma.vmem_to_hbm [thread:$0]  %s854, 4864, %s5, [#allocation4], 128, 128, 8
    $region37: #{tpu_custom_call.1} parent=1 // pred_fallthru
      _
    // Predicated region
    $region38: #{tpu_custom_call.1} parent=1 // pred_check
      _
    $region39: #{tpu_custom_call.1} parent=1 // pred_check_branch
      %861 = sbr.rel (0) target = $region41
    $region40: #{tpu_custom_call.1} parent=1 // pred_region
      %862 = dma.done [#allocation4], 4864
    $region41: #{tpu_custom_call.1} parent=1 // pred_fallthru
      _
    %863 = vsyncpa [#allocation3], 1
    %864 = vsyncpa [#allocation6], 1
    %865 = vsyncpa [#allocation4], 1

// kernel: tpu_custom_call.1
$region0: #{tpu_custom_call.1}
  #allocation0 [shape = 'u32[]', space=smem, size = 0x4, offset = 0x4, fixed_abs, tag = 'smem constant byte address 0x4 - core index']
  #allocation1 [shape = 'u32[144,128]{1,0:T(1,128)}', space=vmem, size = 0x12000, scoped, tag = 'internal scratch']
  %s0 = inlined_call_operand.hbm [shape: f32[300,256], index: 0, kind: input, shape index: {}]
  %s1 = inlined_call_operand.hbm [shape: bf16[256,128], index: 1, kind: input, shape index: {}]
  %s2 = inlined_call_operand.vmem [shape: f32[1,128], index: 2, kind: input, shape index: {}]
  %s3 = inlined_call_operand.hbm [shape: bf16[128,128], index: 3, kind: input, shape index: {}]
  %s4 = inlined_call_operand.vmem [shape: f32[1,128], index: 4, kind: input, shape index: {}]
  %s5 = inlined_call_operand.hbm [shape: f32[300,128], index: 5, kind: output, shape index: {}]
  %s6 = sld [smem:[#allocation0]]
  $region42: #{tpu_custom_call.1} parent=0
    _
  %s8 = ssub.s32 1, %s6
  %s9 = scalar_select 0, %s8, %s6
  $region1: #{tpu_custom_call.1} parent=0
    #allocation2 [shape = 'u8[311296]{0}', space=vmem, size = 0x4c000, scoped, tag = 'input window, operand 0, single buffered']
    #allocation3 [shape = 's32[1]{0}', space=sflag, size = 0x4, scoped, tag = 'scoped memory for tpu_custom_call.1']
    #allocation4 [shape = 's32[1]{0}', space=sflag, size = 0x4, scoped, tag = 'scoped memory for tpu_custom_call.1']
    #allocation5 [shape = 'u8[65536]{0}', space=vmem, size = 0x10000, scoped, tag = 'input window, operand 1, single buffered']
    #allocation6 [shape = 's32[1]{0}', space=sflag, size = 0x4, scoped, tag = 'scoped memory for tpu_custom_call.1']
    #allocation7 [shape = 'u8[32768]{0}', space=vmem, size = 0x8000, scoped, tag = 'input window, operand 3, single buffered']
    #allocation8 [shape = 'u8[155648]{0}', space=vmem, size = 0x26000, scoped, tag = 'output window, operand 0, single buffered']
    %10 = vsyncpa [#allocation3], 0
    %11 = vsyncpa [#allocation6], 0
    %12 = vsyncpa [#allocation4], 0
    // Predicated region
    $region2: #{tpu_custom_call.1} parent=1 // pred_check
      _
    $region3: #{tpu_custom_call.1} parent=1 // pred_check_branch
      %14 = sbr.rel (0) target = $region5
    $region4: #{tpu_custom_call.1} parent=1 // pred_region
      %s16 = ssub.s32 9728, 9728
      %17 = vsyncadd [#allocation3], %s16
      %s18 = sshll.u32 [#allocation2], 4
      %s19 = int_to_ptr.vmem [resolvable:$true] %s18
      %24 = dma.hbm_to_vmem [thread:$0]  %s0, 9728, %s19, [#allocation3], 256, 256, 16
    $region5: #{tpu_custom_call.1} parent=1 // pred_fallthru
      _
    // Predicated region
    $region6: #{tpu_custom_call.1} parent=1 // pred_check
      _
    $region7: #{tpu_custom_call.1} parent=1 // pred_check_branch
      %26 = sbr.rel (0) target = $region9
    $region8: #{tpu_custom_call.1} parent=1 // pred_region
      %s28 = ssub.s32 2048, 2048
      %29 = vsyncadd [#allocation6], %s28
      %s30 = sshll.u32 [#allocation5], 4
      %s31 = int_to_ptr.vmem [resolvable:$true] %s30
      %36 = dma.hbm_to_vmem [thread:$0]  %s1, 2048, %s31, [#allocation6], 64, 64, 4
    $region9: #{tpu_custom_call.1} parent=1 // pred_fallthru
      _
    // Predicated region
    $region10: #{tpu_custom_call.1} parent=1 // pred_check
      _
    $region11: #{tpu_custom_call.1} parent=1 // pred_check_branch
      %38 = sbr.rel (0) target = $region13
    $region12: #{tpu_custom_call.1} parent=1 // pred_region
      _
    $region13: #{tpu_custom_call.1} parent=1 // pred_fallthru
      _
    // Predicated region
    $region14: #{tpu_custom_call.1} parent=1 // pred_check
      _
    $region15: #{tpu_custom_call.1} parent=1 // pred_check_branch
      %40 = sbr.rel (0) target = $region17
    $region16: #{tpu_custom_call.1} parent=1 // pred_region
      %s42 = ssub.s32 1024, 1024
      %43 = vsyncadd [#allocation6], %s42
      %s44 = sshll.u32 [#allocation7], 4
      %s45 = int_to_ptr.vmem [resolvable:$true] %s44
      %50 = dma.hbm_to_vmem [thread:$0]  %s3, 1024, %s45, [#allocation6], 64, 64, 4
    $region17: #{tpu_custom_call.1} parent=1 // pred_fallthru
      _
    // Predicated region
    $region18: #{tpu_custom_call.1} parent=1 // pred_check
      _
    $region19: #{tpu_custom_call.1} parent=1 // pred_check_branch
      %52 = sbr.rel (0) target = $region21
    $region20: #{tpu_custom_call.1} parent=1 // pred_region
      _
    $region21: #{tpu_custom_call.1} parent=1 // pred_fallthru
      _
    // Predicated region
    $region22: #{tpu_custom_call.1} parent=1 // pred_check
      _
    $region23: #{tpu_custom_call.1} parent=1 // pred_check_branch
      %54 = sbr.rel (0) target = $region25
    $region24: #{tpu_custom_call.1} parent=1 // pred_region
      %55 = dma.done [#allocation3], 9728
    $region25: #{tpu_custom_call.1} parent=1 // pred_fallthru
      _
    // Predicated region
    $region26: #{tpu_custom_call.1} parent=1 // pred_check
      _
    $region27: #{tpu_custom_call.1} parent=1 // pred_check_branch
      %57 = sbr.rel (0) target = $region29
    $region28: #{tpu_custom_call.1} parent=1 // pred_region
      %58 = dma.done [#allocation6], 2048
    $region29: #{tpu_custom_call.1} parent=1 // pred_fallthru
      _
    // Predicated region
    $region30: #{tpu_custom_call.1} parent=1 // pred_check
      _
    $region31: #{tpu_custom_call.1} parent=1 // pred_check_branch
      %60 = sbr.rel (0) target = $region33
    $region32: #{tpu_custom_call.1} parent=1 // pred_region
      %61 = dma.done [#allocation6], 1024
    $region33: #{tpu_custom_call.1} parent=1 // pred_fallthru
      _
    %v63 = vld [vmem:[#allocation2] sm:$0xff]
    %v64 = vld [vmem:[#allocation2 + $0x8] sm:$0xff]
    %v65 = vld [vmem:[#allocation2 + $0x10] sm:$0xff]
    %v66 = vld [vmem:[#allocation2 + $0x18] sm:$0xff]
    %v67 = vld [vmem:[#allocation2 + $0x20] sm:$0xff]
    %v68 = vld [vmem:[#allocation2 + $0x28] sm:$0xff]
    %v69 = vld [vmem:[#allocation2 + $0x30] sm:$0xff]
    %v70 = vld [vmem:[#allocation2 + $0x38] sm:$0xff]
    %v71 = vld [vmem:[#allocation2 + $0x40] sm:$0xff]
    %v72 = vld [vmem:[#allocation2 + $0x48] sm:$0xff]
    %v73 = vld [vmem:[#allocation2 + $0x50] sm:$0xff]
    %v74 = vld [vmem:[#allocation2 + $0x58] sm:$0xff]
    %v75 = vld [vmem:[#allocation2 + $0x60] sm:$0xff]
    %v76 = vld [vmem:[#allocation2 + $0x68] sm:$0xff]
    %v77 = vld [vmem:[#allocation2 + $0x70] sm:$0xff]
    %v78 = vld [vmem:[#allocation2 + $0x78] sm:$0xff]
    %v79 = vld [vmem:[#allocation2 + $0x80] sm:$0xff]
    %v80 = vld [vmem:[#allocation2 + $0x88] sm:$0xff]
    %v81 = vld [vmem:[#allocation2 + $0x90] sm:$0xff]
    %v82 = vld [vmem:[#allocation2 + $0x98] sm:$0xff]
    %v83 = vld [vmem:[#allocation2 + $0xa0] sm:$0xff]
    %v84 = vld [vmem:[#allocation2 + $0xa8] sm:$0xff]
    %v85 = vld [vmem:[#allocation2 + $0xb0] sm:$0xff]
    %v86 = vld [vmem:[#allocation2 + $0xb8] sm:$0xff]
    %v87 = vld [vmem:[#allocation2 + $0xc0] sm:$0xff]
    %v88 = vld [vmem:[#allocation2 + $0xc8] sm:$0xff]
    %v89 = vld [vmem:[#allocation2 + $0xd0] sm:$0xff]
    %v90 = vld [vmem:[#allocation2 + $0xd8] sm:$0xff]
    %v91 = vld [vmem:[#allocation2 + $0xe0] sm:$0xff]
    %v92 = vld [vmem:[#allocation2 + $0xe8] sm:$0xff]
    %v93 = vld [vmem:[#allocation2 + $0xf0] sm:$0xff]
    %v94 = vld [vmem:[#allocation2 + $0xf8] sm:$0xff]
    %v95 = vld [vmem:[#allocation2 + $0x100] sm:$0xff]
    %v96 = vld [vmem:[#allocation2 + $0x108] sm:$0xff]
    %v97 = vld [vmem:[#allocation2 + $0x110] sm:$0xff]
    %v98 = vld [vmem:[#allocation2 + $0x118] sm:$0xff]
    %v99 = vld [vmem:[#allocation2 + $0x120] sm:$0xff]
    %v100 = vld [vmem:[#allocation2 + $0x128] sm:$0xff]
    %v101 = vld [vmem:[#allocation2 + $0x130] sm:$0xff]
    %v102 = vld [vmem:[#allocation2 + $0x138] sm:$0xff]
    %v103 = vld [vmem:[#allocation2 + $0x140] sm:$0xff]
    %v104 = vld [vmem:[#allocation2 + $0x148] sm:$0xff]
    %v105 = vld [vmem:[#allocation2 + $0x150] sm:$0xff]
    %v106 = vld [vmem:[#allocation2 + $0x158] sm:$0xff]
    %v107 = vld [vmem:[#allocation2 + $0x160] sm:$0xff]
    %v108 = vld [vmem:[#allocation2 + $0x168] sm:$0xff]
    %v109 = vld [vmem:[#allocation2 + $0x170] sm:$0xff]
    %v110 = vld [vmem:[#allocation2 + $0x178] sm:$0xff]
    %v111 = vld [vmem:[#allocation2 + $0x180] sm:$0xff]
    %v112 = vld [vmem:[#allocation2 + $0x188] sm:$0xff]
    %v113 = vld [vmem:[#allocation2 + $0x190] sm:$0xff]
    %v114 = vld [vmem:[#allocation2 + $0x198] sm:$0xff]
    %v115 = vld [vmem:[#allocation2 + $0x1a0] sm:$0xff]
    %v116 = vld [vmem:[#allocation2 + $0x1a8] sm:$0xff]
    %v117 = vld [vmem:[#allocation2 + $0x1b0] sm:$0xff]
    %v118 = vld [vmem:[#allocation2 + $0x1b8] sm:$0xff]
    %v119 = vld [vmem:[#allocation2 + $0x1c0] sm:$0xff]
    %v120 = vld [vmem:[#allocation2 + $0x1c8] sm:$0xff]
    %v121 = vld [vmem:[#allocation2 + $0x1d0] sm:$0xff]
    %v122 = vld [vmem:[#allocation2 + $0x1d8] sm:$0xff]
    %v123 = vld [vmem:[#allocation2 + $0x1e0] sm:$0xff]
    %v124 = vld [vmem:[#allocation2 + $0x1e8] sm:$0xff]
    %v125 = vld [vmem:[#allocation2 + $0x1f0] sm:$0xff]
    %v126 = vld [vmem:[#allocation2 + $0x1f8] sm:$0xff]
    %v127 = vld [vmem:[#allocation2 + $0x200] sm:$0xff]
    %v128 = vld [vmem:[#allocation2 + $0x208] sm:$0xff]
    %v129 = vld [vmem:[#allocation2 + $0x210] sm:$0xff]
    %v130 = vld [vmem:[#allocation2 + $0x218] sm:$0xff]
    %v131 = vld [vmem:[#allocation2 + $0x220] sm:$0xff]
    %v132 = vld [vmem:[#allocation2 + $0x228] sm:$0xff]
    %v133 = vld [vmem:[#allocation2 + $0x230] sm:$0xff]
    %v134 = vld [vmem:[#allocation2 + $0x238] sm:$0xff]
    %v135 = vld [vmem:[#allocation2 + $0x240] sm:$0xff]
    %v136 = vld [vmem:[#allocation2 + $0x248] sm:$0xff]
    %v137 = vld [vmem:[#allocation2 + $0x250] sm:$0xff]
    %v138 = vld [vmem:[#allocation2 + $0x258] sm:$0xff]
    %v139 = vpack.c.bf16 %v65, %v63
    %v140 = vpack.c.bf16 %v66, %v64
    %v141 = vpack.c.bf16 %v69, %v67
    %v142 = vpack.c.bf16 %v70, %v68
    %v143 = vpack.c.bf16 %v73, %v71
    %v144 = vpack.c.bf16 %v74, %v72
    %v145 = vpack.c.bf16 %v77, %v75
    %v146 = vpack.c.bf16 %v78, %v76
    %v147 = vpack.c.bf16 %v81, %v79
    %v148 = vpack.c.bf16 %v82, %v80
    %v149 = vpack.c.bf16 %v85, %v83
    %v150 = vpack.c.bf16 %v86, %v84
    %v151 = vpack.c.bf16 %v89, %v87
    %v152 = vpack.c.bf16 %v90, %v88
    %v153 = vpack.c.bf16 %v93, %v91
    %v154 = vpack.c.bf16 %v94, %v92
    %v155 = vpack.c.bf16 %v97, %v95
    %v156 = vpack.c.bf16 %v98, %v96
    %v157 = vpack.c.bf16 %v101, %v99
    %v158 = vpack.c.bf16 %v102, %v100
    %v159 = vpack.c.bf16 %v105, %v103
    %v160 = vpack.c.bf16 %v106, %v104
    %v161 = vpack.c.bf16 %v109, %v107
    %v162 = vpack.c.bf16 %v110, %v108
    %v163 = vpack.c.bf16 %v113, %v111
    %v164 = vpack.c.bf16 %v114, %v112
    %v165 = vpack.c.bf16 %v117, %v115
    %v166 = vpack.c.bf16 %v118, %v116
    %v167 = vpack.c.bf16 %v121, %v119
    %v168 = vpack.c.bf16 %v122, %v120
    %v169 = vpack.c.bf16 %v125, %v123
    %v170 = vpack.c.bf16 %v126, %v124
    %v171 = vpack.c.bf16 %v129, %v127
    %v172 = vpack.c.bf16 %v130, %v128
    %v173 = vpack.c.bf16 %v133, %v131
    %v174 = vpack.c.bf16 %v134, %v132
    %v175 = vpack.c.bf16 %v137, %v135
    %v176 = vpack.c.bf16 %v138, %v136
    %v177 = vld [vmem:[#allocation5] sm:$0xf]
    %v178 = vld [vmem:[#allocation5 + $0x4] sm:$0xf]
    %v179 = vld [vmem:[#allocation5 + $0x8] sm:$0xf]
    %v180 = vld [vmem:[#allocation5 + $0xc] sm:$0xf]
    %v181 = vld [vmem:[#allocation5 + $0x10] sm:$0xf]
    %v182 = vld [vmem:[#allocation5 + $0x14] sm:$0xf]
    %v183 = vld [vmem:[#allocation5 + $0x18] sm:$0xf]
    %v184 = vld [vmem:[#allocation5 + $0x1c] sm:$0xf]
    %v185 = vld [vmem:[#allocation5 + $0x20] sm:$0xf]
    %v186 = vld [vmem:[#allocation5 + $0x24] sm:$0xf]
    %v187 = vld [vmem:[#allocation5 + $0x28] sm:$0xf]
    %v188 = vld [vmem:[#allocation5 + $0x2c] sm:$0xf]
    %v189 = vld [vmem:[#allocation5 + $0x30] sm:$0xf]
    %v190 = vld [vmem:[#allocation5 + $0x34] sm:$0xf]
    %v191 = vld [vmem:[#allocation5 + $0x38] sm:$0xf]
    %v192 = vld [vmem:[#allocation5 + $0x3c] sm:$0xf]
    %v193 = vld [vmem:[#allocation5 + $0x40] sm:$0xf]
    %v194 = vld [vmem:[#allocation5 + $0x44] sm:$0xf]
    %v195 = vld [vmem:[#allocation5 + $0x48] sm:$0xf]
    %v196 = vld [vmem:[#allocation5 + $0x4c] sm:$0xf]
    %v197 = vld [vmem:[#allocation5 + $0x50] sm:$0xf]
    %v198 = vld [vmem:[#allocation5 + $0x54] sm:$0xf]
    %v199 = vld [vmem:[#allocation5 + $0x58] sm:$0xf]
    %v200 = vld [vmem:[#allocation5 + $0x5c] sm:$0xf]
    %v201 = vld [vmem:[#allocation5 + $0x60] sm:$0xf]
    %v202 = vld [vmem:[#allocation5 + $0x64] sm:$0xf]
    %v203 = vld [vmem:[#allocation5 + $0x68] sm:$0xf]
    %v204 = vld [vmem:[#allocation5 + $0x6c] sm:$0xf]
    %v205 = vld [vmem:[#allocation5 + $0x70] sm:$0xf]
    %v206 = vld [vmem:[#allocation5 + $0x74] sm:$0xf]
    %v207 = vld [vmem:[#allocation5 + $0x78] sm:$0xf]
    %v208 = vld [vmem:[#allocation5 + $0x7c] sm:$0xf]
    %v209 = vld [vmem:[%s2] sm:$0x1]
    %v211 = vlaneseq
    %v212 = vshrl.u32 %v211, 7
    %v213 = vsub.s32 0, %v212
    %v214 = vrot.slane %v209, %v213
    %v248 = vunpack.c.l.b16 %v177
    %v249 = vunpack.c.l.b16 %v178
    %v250 = vunpack.c.l.b16 %v179
    %v251 = vunpack.c.l.b16 %v180
    %v252 = vunpack.c.l.b16 %v181
    %v253 = vunpack.c.l.b16 %v182
    %v254 = vunpack.c.l.b16 %v183
    %v255 = vunpack.c.l.b16 %v184
    %v256 = vunpack.c.l.b16 %v185
    %v257 = vunpack.c.l.b16 %v186
    %v258 = vunpack.c.l.b16 %v187
    %v259 = vunpack.c.l.b16 %v188
    %v260 = vunpack.c.l.b16 %v189
    %v261 = vunpack.c.l.b16 %v190
    %v262 = vunpack.c.l.b16 %v191
    %v263 = vunpack.c.l.b16 %v192
    %v264 = vunpack.c.l.b16 %v193
    %v265 = vunpack.c.l.b16 %v194
    %v266 = vunpack.c.l.b16 %v195
    %v267 = vunpack.c.l.b16 %v196
    %v268 = vunpack.c.l.b16 %v197
    %v269 = vunpack.c.l.b16 %v198
    %v270 = vunpack.c.l.b16 %v199
    %v271 = vunpack.c.l.b16 %v200
    %v272 = vunpack.c.l.b16 %v201
    %v273 = vunpack.c.l.b16 %v202
    %v274 = vunpack.c.l.b16 %v203
    %v275 = vunpack.c.l.b16 %v204
    %v276 = vunpack.c.l.b16 %v205
    %v277 = vunpack.c.l.b16 %v206
    %v278 = vunpack.c.l.b16 %v207
    %v279 = vunpack.c.l.b16 %v208
    %v280 = vpack.c.b16 %v249, %v248
    %v281 = vpack.c.b16 %v251, %v250
    %v282 = vpack.c.b16 %v253, %v252
    %v283 = vpack.c.b16 %v255, %v254
    %v284 = vpack.c.b16 %v257, %v256
    %v285 = vpack.c.b16 %v259, %v258
    %v286 = vpack.c.b16 %v261, %v260
    %v287 = vpack.c.b16 %v263, %v262
    %v288 = vpack.c.b16 %v265, %v264
    %v289 = vpack.c.b16 %v267, %v266
    %v290 = vpack.c.b16 %v269, %v268
    %v291 = vpack.c.b16 %v271, %v270
    %v292 = vpack.c.b16 %v273, %v272
    %v293 = vpack.c.b16 %v275, %v274
    %v294 = vpack.c.b16 %v277, %v276
    %v295 = vpack.c.b16 %v279, %v278
    %312 = vmatprep.subr.bf16.mxu0 0
    %313 = vmatpush1.bf16.msra.mxu0 %v287
    %314 = vmatprep.subr.bf16.mxu0 0
    %315 = vmatpush1.bf16.msra.mxu0 %v286
    %316 = vmatprep.subr.bf16.mxu0 0
    %317 = vmatpush1.bf16.msra.mxu0 %v285
    %318 = vmatprep.subr.bf16.mxu0 0
    %319 = vmatpush1.bf16.msra.mxu0 %v284
    %320 = vmatprep.subr.bf16.mxu0 0
    %321 = vmatpush1.bf16.msra.mxu0 %v283
    %322 = vmatprep.subr.bf16.mxu0 0
    %323 = vmatpush1.bf16.msra.mxu0 %v282
    %324 = vmatprep.subr.bf16.mxu0 0
    %325 = vmatpush1.bf16.msra.mxu0 %v281
    %326 = vmatprep.subr.bf16.mxu0 0
    %327 = vmatpush1.bf16.msra.mxu0 %v280
    %328 = vmatprep.subr.bf16.mxu0 0
    %329 = vmatpush2.bf16.msra.mxu0 %v295
    %330 = vmatprep.subr.bf16.mxu0 0
    %331 = vmatpush2.bf16.msra.mxu0 %v294
    %332 = vmatprep.subr.bf16.mxu0 0
    %333 = vmatpush2.bf16.msra.mxu0 %v293
    %334 = vmatprep.subr.bf16.mxu0 0
    %335 = vmatpush2.bf16.msra.mxu0 %v292
    %336 = vmatprep.subr.bf16.mxu0 0
    %337 = vmatpush2.bf16.msra.mxu0 %v291
    %338 = vmatprep.subr.bf16.mxu0 0
    %339 = vmatpush2.bf16.msra.mxu0 %v290
    %340 = vmatprep.subr.bf16.mxu0 0
    %341 = vmatpush2.bf16.msra.mxu0 %v289
    %342 = vmatprep.subr.bf16.mxu0 0
    %343 = vmatpush2.bf16.msra.mxu0 %v288
    %344 = vmatprep.mubr.bf16.mxu0 %v140
    %345 = vmatmul.mubr.bf16.gmra.mxu0 %v139
    %v346 = vpop.f32.mrf.mxu0
    %v347 = vadd.f32 %v214, %v346
    %v348 = vpop.f32.mrf.mxu0
    %v349 = vpop.f32.mrf.mxu0
    %v350 = vadd.f32 %v214, %v349
    %v351 = vpop.f32.mrf.mxu0
    %352 = vmatprep.mubr.bf16.mxu0 %v142
    %353 = vmatmul.mubr.bf16.gmra.mxu0 %v141
    %v354 = vpop.f32.mrf.mxu0
    %v355 = vadd.f32 %v214, %v354
    %v356 = vpop.f32.mrf.mxu0
    %v357 = vpop.f32.mrf.mxu0
    %v358 = vadd.f32 %v214, %v357
    %v359 = vpop.f32.mrf.mxu0
    %360 = vmatprep.mubr.bf16.mxu0 %v144
    %361 = vmatmul.mubr.bf16.gmra.mxu0 %v143
    %v362 = vpop.f32.mrf.mxu0
    %v363 = vadd.f32 %v214, %v362
    %v364 = vpop.f32.mrf.mxu0
    %v365 = vpop.f32.mrf.mxu0
    %v366 = vadd.f32 %v214, %v365
    %v367 = vpop.f32.mrf.mxu0
    %368 = vmatprep.mubr.bf16.mxu0 %v146
    %369 = vmatmul.mubr.bf16.gmra.mxu0 %v145
    %v370 = vpop.f32.mrf.mxu0
    %v371 = vadd.f32 %v214, %v370
    %v372 = vpop.f32.mrf.mxu0
    %v373 = vpop.f32.mrf.mxu0
    %v374 = vadd.f32 %v214, %v373
    %v375 = vpop.f32.mrf.mxu0
    %376 = vmatprep.mubr.bf16.mxu0 %v148
    %377 = vmatmul.mubr.bf16.gmra.mxu0 %v147
    %v378 = vpop.f32.mrf.mxu0
    %v379 = vadd.f32 %v214, %v378
    %v380 = vpop.f32.mrf.mxu0
    %v381 = vpop.f32.mrf.mxu0
    %v382 = vadd.f32 %v214, %v381
    %v383 = vpop.f32.mrf.mxu0
    %384 = vmatprep.mubr.bf16.mxu0 %v150
    %385 = vmatmul.mubr.bf16.gmra.mxu0 %v149
    %v386 = vpop.f32.mrf.mxu0
    %v387 = vadd.f32 %v214, %v386
    %v388 = vpop.f32.mrf.mxu0
    %v389 = vpop.f32.mrf.mxu0
    %v390 = vadd.f32 %v214, %v389
    %v391 = vpop.f32.mrf.mxu0
    %392 = vmatprep.mubr.bf16.mxu0 %v152
    %393 = vmatmul.mubr.bf16.gmra.mxu0 %v151
    %v394 = vpop.f32.mrf.mxu0
    %v395 = vadd.f32 %v214, %v394
    %v396 = vpop.f32.mrf.mxu0
    %v397 = vpop.f32.mrf.mxu0
    %v398 = vadd.f32 %v214, %v397
    %v399 = vpop.f32.mrf.mxu0
    %400 = vmatprep.mubr.bf16.mxu0 %v154
    %401 = vmatmul.mubr.bf16.gmra.mxu0 %v153
    %v402 = vpop.f32.mrf.mxu0
    %v403 = vadd.f32 %v214, %v402
    %v404 = vpop.f32.mrf.mxu0
    %v405 = vpop.f32.mrf.mxu0
    %v406 = vadd.f32 %v214, %v405
    %v407 = vpop.f32.mrf.mxu0
    %408 = vmatprep.mubr.bf16.mxu0 %v156
    %409 = vmatmul.mubr.bf16.gmra.mxu0 %v155
    %v410 = vpop.f32.mrf.mxu0
    %v411 = vadd.f32 %v214, %v410
    %v412 = vpop.f32.mrf.mxu0
    %v413 = vpop.f32.mrf.mxu0
    %v414 = vadd.f32 %v214, %v413
    %v415 = vpop.f32.mrf.mxu0
    %416 = vmatprep.mubr.bf16.mxu0 %v158
    %417 = vmatmul.mubr.bf16.gmra.mxu0 %v157
    %v418 = vpop.f32.mrf.mxu0
    %v419 = vadd.f32 %v214, %v418
    %v420 = vpop.f32.mrf.mxu0
    %v421 = vpop.f32.mrf.mxu0
    %v422 = vadd.f32 %v214, %v421
    %v423 = vpop.f32.mrf.mxu0
    %424 = vmatprep.mubr.bf16.mxu0 %v160
    %425 = vmatmul.mubr.bf16.gmra.mxu0 %v159
    %v426 = vpop.f32.mrf.mxu0
    %v427 = vadd.f32 %v214, %v426
    %v428 = vpop.f32.mrf.mxu0
    %v429 = vpop.f32.mrf.mxu0
    %v430 = vadd.f32 %v214, %v429
    %v431 = vpop.f32.mrf.mxu0
    %432 = vmatprep.mubr.bf16.mxu0 %v162
    %433 = vmatmul.mubr.bf16.gmra.mxu0 %v161
    %v434 = vpop.f32.mrf.mxu0
    %v435 = vadd.f32 %v214, %v434
    %v436 = vpop.f32.mrf.mxu0
    %v437 = vpop.f32.mrf.mxu0
    %v438 = vadd.f32 %v214, %v437
    %v439 = vpop.f32.mrf.mxu0
    %440 = vmatprep.mubr.bf16.mxu0 %v164
    %441 = vmatmul.mubr.bf16.gmra.mxu0 %v163
    %v442 = vpop.f32.mrf.mxu0
    %v443 = vadd.f32 %v214, %v442
    %v444 = vpop.f32.mrf.mxu0
    %v445 = vpop.f32.mrf.mxu0
    %v446 = vadd.f32 %v214, %v445
    %v447 = vpop.f32.mrf.mxu0
    %448 = vmatprep.mubr.bf16.mxu0 %v166
    %449 = vmatmul.mubr.bf16.gmra.mxu0 %v165
    %v450 = vpop.f32.mrf.mxu0
    %v451 = vadd.f32 %v214, %v450
    %v452 = vpop.f32.mrf.mxu0
    %v453 = vpop.f32.mrf.mxu0
    %v454 = vadd.f32 %v214, %v453
    %v455 = vpop.f32.mrf.mxu0
    %456 = vmatprep.mubr.bf16.mxu0 %v168
    %457 = vmatmul.mubr.bf16.gmra.mxu0 %v167
    %v458 = vpop.f32.mrf.mxu0
    %v459 = vadd.f32 %v214, %v458
    %v460 = vpop.f32.mrf.mxu0
    %v461 = vpop.f32.mrf.mxu0
    %v462 = vadd.f32 %v214, %v461
    %v463 = vpop.f32.mrf.mxu0
    %464 = vmatprep.mubr.bf16.mxu0 %v170
    %465 = vmatmul.mubr.bf16.gmra.mxu0 %v169
    %v466 = vpop.f32.mrf.mxu0
    %v467 = vadd.f32 %v214, %v466
    %v468 = vpop.f32.mrf.mxu0
    %v469 = vpop.f32.mrf.mxu0
    %v470 = vadd.f32 %v214, %v469
    %v471 = vpop.f32.mrf.mxu0
    %472 = vmatprep.mubr.bf16.mxu0 %v172
    %473 = vmatmul.mubr.bf16.gmra.mxu0 %v171
    %v474 = vpop.f32.mrf.mxu0
    %v475 = vadd.f32 %v214, %v474
    %v476 = vpop.f32.mrf.mxu0
    %v477 = vpop.f32.mrf.mxu0
    %v478 = vadd.f32 %v214, %v477
    %v479 = vpop.f32.mrf.mxu0
    %480 = vmatprep.mubr.bf16.mxu0 %v174
    %481 = vmatmul.mubr.bf16.gmra.mxu0 %v173
    %v482 = vpop.f32.mrf.mxu0
    %v483 = vadd.f32 %v214, %v482
    %v484 = vpop.f32.mrf.mxu0
    %v485 = vpop.f32.mrf.mxu0
    %v486 = vadd.f32 %v214, %v485
    %v487 = vpop.f32.mrf.mxu0
    %488 = vmatprep.mubr.bf16.mxu0 %v176
    %489 = vmatmul.mubr.bf16.gmra.mxu0 %v175
    %v490 = vpop.f32.mrf.mxu0
    %v491 = vadd.f32 %v214, %v490
    %v492 = vpop.f32.mrf.mxu0
    %v493 = vpop.f32.mrf.mxu0
    %v494 = vadd.f32 %v214, %v493
    %v495 = vpop.f32.mrf.mxu0
    %496 = vdwg.mxu0
    %v497 = vmax.f32 %v347, 0.0
    %v498 = vmax.f32 %v350, 0.0
    %v499 = vmax.f32 %v355, 0.0
    %v500 = vmax.f32 %v358, 0.0
    %v501 = vmax.f32 %v363, 0.0
    %v502 = vmax.f32 %v366, 0.0
    %v503 = vmax.f32 %v371, 0.0
    %v504 = vmax.f32 %v374, 0.0
    %v505 = vmax.f32 %v379, 0.0
    %v506 = vmax.f32 %v382, 0.0
    %v507 = vmax.f32 %v387, 0.0
    %v508 = vmax.f32 %v390, 0.0
    %v509 = vmax.f32 %v395, 0.0
    %v510 = vmax.f32 %v398, 0.0
    %v511 = vmax.f32 %v403, 0.0
    %v512 = vmax.f32 %v406, 0.0
    %v513 = vmax.f32 %v411, 0.0
    %v514 = vmax.f32 %v414, 0.0
    %v515 = vmax.f32 %v419, 0.0
    %v516 = vmax.f32 %v422, 0.0
    %v517 = vmax.f32 %v427, 0.0
    %v518 = vmax.f32 %v430, 0.0
    %v519 = vmax.f32 %v435, 0.0
    %v520 = vmax.f32 %v438, 0.0
    %v521 = vmax.f32 %v443, 0.0
    %v522 = vmax.f32 %v446, 0.0
    %v523 = vmax.f32 %v451, 0.0
    %v524 = vmax.f32 %v454, 0.0
    %v525 = vmax.f32 %v459, 0.0
    %v526 = vmax.f32 %v462, 0.0
    %v527 = vmax.f32 %v467, 0.0
    %v528 = vmax.f32 %v470, 0.0
    %v529 = vmax.f32 %v475, 0.0
    %v530 = vmax.f32 %v478, 0.0
    %v531 = vmax.f32 %v483, 0.0
    %v532 = vmax.f32 %v486, 0.0
    %v533 = vmax.f32 %v491, 0.0
    %v534 = vmax.f32 %v494, 0.0
    %v535 = vpack.c.bf16 %v498, %v497
    %v536 = vpack.c.bf16 %v500, %v499
    %v537 = vpack.c.bf16 %v502, %v501
    %v538 = vpack.c.bf16 %v504, %v503
    %v539 = vpack.c.bf16 %v506, %v505
    %v540 = vpack.c.bf16 %v508, %v507
    %v541 = vpack.c.bf16 %v510, %v509
    %v542 = vpack.c.bf16 %v512, %v511
    %v543 = vpack.c.bf16 %v514, %v513
    %v544 = vpack.c.bf16 %v516, %v515
    %v545 = vpack.c.bf16 %v518, %v517
    %v546 = vpack.c.bf16 %v520, %v519
    %v547 = vpack.c.bf16 %v522, %v521
    %v548 = vpack.c.bf16 %v524, %v523
    %v549 = vpack.c.bf16 %v526, %v525
    %v550 = vpack.c.bf16 %v528, %v527
    %v551 = vpack.c.bf16 %v530, %v529
    %v552 = vpack.c.bf16 %v532, %v531
    %v553 = vpack.c.bf16 %v534, %v533
    %v554 = vld [vmem:[#allocation7] sm:$0xf]
    %v555 = vld [vmem:[#allocation7 + $0x4] sm:$0xf]
    %v556 = vld [vmem:[#allocation7 + $0x8] sm:$0xf]
    %v557 = vld [vmem:[#allocation7 + $0xc] sm:$0xf]
    %v558 = vld [vmem:[#allocation7 + $0x10] sm:$0xf]
    %v559 = vld [vmem:[#allocation7 + $0x14] sm:$0xf]
    %v560 = vld [vmem:[#allocation7 + $0x18] sm:$0xf]
    %v561 = vld [vmem:[#allocation7 + $0x1c] sm:$0xf]
    %v562 = vld [vmem:[#allocation7 + $0x20] sm:$0xf]
    %v563 = vld [vmem:[#allocation7 + $0x24] sm:$0xf]
    %v564 = vld [vmem:[#allocation7 + $0x28] sm:$0xf]
    %v565 = vld [vmem:[#allocation7 + $0x2c] sm:$0xf]
    %v566 = vld [vmem:[#allocation7 + $0x30] sm:$0xf]
    %v567 = vld [vmem:[#allocation7 + $0x34] sm:$0xf]
    %v568 = vld [vmem:[#allocation7 + $0x38] sm:$0xf]
    %v569 = vld [vmem:[#allocation7 + $0x3c] sm:$0xf]
    %v570 = vld [vmem:[%s4] sm:$0x1]
    %v572 = vlaneseq
    %v573 = vshrl.u32 %v572, 7
    %v574 = vsub.s32 0, %v573
    %v575 = vrot.slane %v570, %v574
    %v593 = vunpack.c.l.b16 %v554
    %v594 = vunpack.c.l.b16 %v555
    %v595 = vunpack.c.l.b16 %v556
    %v596 = vunpack.c.l.b16 %v557
    %v597 = vunpack.c.l.b16 %v558
    %v598 = vunpack.c.l.b16 %v559
    %v599 = vunpack.c.l.b16 %v560
    %v600 = vunpack.c.l.b16 %v561
    %v601 = vunpack.c.l.b16 %v562
    %v602 = vunpack.c.l.b16 %v563
    %v603 = vunpack.c.l.b16 %v564
    %v604 = vunpack.c.l.b16 %v565
    %v605 = vunpack.c.l.b16 %v566
    %v606 = vunpack.c.l.b16 %v567
    %v607 = vunpack.c.l.b16 %v568
    %v608 = vunpack.c.l.b16 %v569
    %v609 = vpack.c.b16 %v594, %v593
    %v610 = vpack.c.b16 %v596, %v595
    %v611 = vpack.c.b16 %v598, %v597
    %v612 = vpack.c.b16 %v600, %v599
    %v613 = vpack.c.b16 %v602, %v601
    %v614 = vpack.c.b16 %v604, %v603
    %v615 = vpack.c.b16 %v606, %v605
    %v616 = vpack.c.b16 %v608, %v607
    %625 = vmatprep.subr.bf16.mxu0 0
    %626 = vmatpush1.bf16.msra.mxu0 %v616
    %627 = vmatprep.subr.bf16.mxu0 0
    %628 = vmatpush1.bf16.msra.mxu0 %v615
    %629 = vmatprep.subr.bf16.mxu0 0
    %630 = vmatpush1.bf16.msra.mxu0 %v614
    %631 = vmatprep.subr.bf16.mxu0 0
    %632 = vmatpush1.bf16.msra.mxu0 %v613
    %633 = vmatprep.subr.bf16.mxu0 0
    %634 = vmatpush1.bf16.msra.mxu0 %v612
    %635 = vmatprep.subr.bf16.mxu0 0
    %636 = vmatpush1.bf16.msra.mxu0 %v611
    %637 = vmatprep.subr.bf16.mxu0 0
    %638 = vmatpush1.bf16.msra.mxu0 %v610
    %639 = vmatprep.subr.bf16.mxu0 0
    %640 = vmatpush1.bf16.msra.mxu0 %v609
    %641 = vmatprep.subr.bf16.mxu0 0
    %642 = vmatpush2.bf16.msra.mxu0 0
    %643 = vmatprep.subr.bf16.mxu0 0
    %644 = vmatpush2.bf16.msra.mxu0 0
    %645 = vmatprep.subr.bf16.mxu0 0
    %646 = vmatpush2.bf16.msra.mxu0 0
    %647 = vmatprep.subr.bf16.mxu0 0
    %648 = vmatpush2.bf16.msra.mxu0 0
    %649 = vmatprep.subr.bf16.mxu0 0
    %650 = vmatpush2.bf16.msra.mxu0 0
    %651 = vmatprep.subr.bf16.mxu0 0
    %652 = vmatpush2.bf16.msra.mxu0 0
    %653 = vmatprep.subr.bf16.mxu0 0
    %654 = vmatpush2.bf16.msra.mxu0 0
    %655 = vmatprep.subr.bf16.mxu0 0
    %656 = vmatpush2.bf16.msra.mxu0 0
    %657 = vmatprep.mubr.bf16.mxu0 0
    %658 = vmatmul.mubr.bf16.gmra.mxu0 %v535
    %v659 = vpop.f32.mrf.mxu0
    %v660 = vadd.f32 %v575, %v659
    %v661 = vpop.f32.mrf.mxu0
    %v662 = vpop.f32.mrf.mxu0
    %v663 = vadd.f32 %v575, %v662
    %v664 = vpop.f32.mrf.mxu0
    %665 = vmatprep.mubr.bf16.mxu0 0
    %666 = vmatmul.mubr.bf16.gmra.mxu0 %v536
    %v667 = vpop.f32.mrf.mxu0
    %v668 = vadd.f32 %v575, %v667
    %v669 = vpop.f32.mrf.mxu0
    %v670 = vpop.f32.mrf.mxu0
    %v671 = vadd.f32 %v575, %v670
    %v672 = vpop.f32.mrf.mxu0
    %673 = vmatprep.mubr.bf16.mxu0 0
    %674 = vmatmul.mubr.bf16.gmra.mxu0 %v537
    %v675 = vpop.f32.mrf.mxu0
    %v676 = vadd.f32 %v575, %v675
    %v677 = vpop.f32.mrf.mxu0
    %v678 = vpop.f32.mrf.mxu0
    %v679 = vadd.f32 %v575, %v678
    %v680 = vpop.f32.mrf.mxu0
    %681 = vmatprep.mubr.bf16.mxu0 0
    %682 = vmatmul.mubr.bf16.gmra.mxu0 %v538
    %v683 = vpop.f32.mrf.mxu0
    %v684 = vadd.f32 %v575, %v683
    %v685 = vpop.f32.mrf.mxu0
    %v686 = vpop.f32.mrf.mxu0
    %v687 = vadd.f32 %v575, %v686
    %v688 = vpop.f32.mrf.mxu0
    %689 = vmatprep.mubr.bf16.mxu0 0
    %690 = vmatmul.mubr.bf16.gmra.mxu0 %v539
    %v691 = vpop.f32.mrf.mxu0
    %v692 = vadd.f32 %v575, %v691
    %v693 = vpop.f32.mrf.mxu0
    %v694 = vpop.f32.mrf.mxu0
    %v695 = vadd.f32 %v575, %v694
    %v696 = vpop.f32.mrf.mxu0
    %697 = vmatprep.mubr.bf16.mxu0 0
    %698 = vmatmul.mubr.bf16.gmra.mxu0 %v540
    %v699 = vpop.f32.mrf.mxu0
    %v700 = vadd.f32 %v575, %v699
    %v701 = vpop.f32.mrf.mxu0
    %v702 = vpop.f32.mrf.mxu0
    %v703 = vadd.f32 %v575, %v702
    %v704 = vpop.f32.mrf.mxu0
    %705 = vmatprep.mubr.bf16.mxu0 0
    %706 = vmatmul.mubr.bf16.gmra.mxu0 %v541
    %v707 = vpop.f32.mrf.mxu0
    %v708 = vadd.f32 %v575, %v707
    %v709 = vpop.f32.mrf.mxu0
    %v710 = vpop.f32.mrf.mxu0
    %v711 = vadd.f32 %v575, %v710
    %v712 = vpop.f32.mrf.mxu0
    %713 = vmatprep.mubr.bf16.mxu0 0
    %714 = vmatmul.mubr.bf16.gmra.mxu0 %v542
    %v715 = vpop.f32.mrf.mxu0
    %v716 = vadd.f32 %v575, %v715
    %v717 = vpop.f32.mrf.mxu0
    %v718 = vpop.f32.mrf.mxu0
    %v719 = vadd.f32 %v575, %v718
    %v720 = vpop.f32.mrf.mxu0
    %721 = vmatprep.mubr.bf16.mxu0 0
    %722 = vmatmul.mubr.bf16.gmra.mxu0 %v543
    %v723 = vpop.f32.mrf.mxu0
    %v724 = vadd.f32 %v575, %v723
    %v725 = vpop.f32.mrf.mxu0
    %v726 = vpop.f32.mrf.mxu0
    %v727 = vadd.f32 %v575, %v726
    %v728 = vpop.f32.mrf.mxu0
    %729 = vmatprep.mubr.bf16.mxu0 0
    %730 = vmatmul.mubr.bf16.gmra.mxu0 %v544
    %v731 = vpop.f32.mrf.mxu0
    %v732 = vadd.f32 %v575, %v731
    %v733 = vpop.f32.mrf.mxu0
    %v734 = vpop.f32.mrf.mxu0
    %v735 = vadd.f32 %v575, %v734
    %v736 = vpop.f32.mrf.mxu0
    %737 = vmatprep.mubr.bf16.mxu0 0
    %738 = vmatmul.mubr.bf16.gmra.mxu0 %v545
    %v739 = vpop.f32.mrf.mxu0
    %v740 = vadd.f32 %v575, %v739
    %v741 = vpop.f32.mrf.mxu0
    %v742 = vpop.f32.mrf.mxu0
    %v743 = vadd.f32 %v575, %v742
    %v744 = vpop.f32.mrf.mxu0
    %745 = vmatprep.mubr.bf16.mxu0 0
    %746 = vmatmul.mubr.bf16.gmra.mxu0 %v546
    %v747 = vpop.f32.mrf.mxu0
    %v748 = vadd.f32 %v575, %v747
    %v749 = vpop.f32.mrf.mxu0
    %v750 = vpop.f32.mrf.mxu0
    %v751 = vadd.f32 %v575, %v750
    %v752 = vpop.f32.mrf.mxu0
    %753 = vmatprep.mubr.bf16.mxu0 0
    %754 = vmatmul.mubr.bf16.gmra.mxu0 %v547
    %v755 = vpop.f32.mrf.mxu0
    %v756 = vadd.f32 %v575, %v755
    %v757 = vpop.f32.mrf.mxu0
    %v758 = vpop.f32.mrf.mxu0
    %v759 = vadd.f32 %v575, %v758
    %v760 = vpop.f32.mrf.mxu0
    %761 = vmatprep.mubr.bf16.mxu0 0
    %762 = vmatmul.mubr.bf16.gmra.mxu0 %v548
    %v763 = vpop.f32.mrf.mxu0
    %v764 = vadd.f32 %v575, %v763
    %v765 = vpop.f32.mrf.mxu0
    %v766 = vpop.f32.mrf.mxu0
    %v767 = vadd.f32 %v575, %v766
    %v768 = vpop.f32.mrf.mxu0
    %769 = vmatprep.mubr.bf16.mxu0 0
    %770 = vmatmul.mubr.bf16.gmra.mxu0 %v549
    %v771 = vpop.f32.mrf.mxu0
    %v772 = vadd.f32 %v575, %v771
    %v773 = vpop.f32.mrf.mxu0
    %v774 = vpop.f32.mrf.mxu0
    %v775 = vadd.f32 %v575, %v774
    %v776 = vpop.f32.mrf.mxu0
    %777 = vmatprep.mubr.bf16.mxu0 0
    %778 = vmatmul.mubr.bf16.gmra.mxu0 %v550
    %v779 = vpop.f32.mrf.mxu0
    %v780 = vadd.f32 %v575, %v779
    %v781 = vpop.f32.mrf.mxu0
    %v782 = vpop.f32.mrf.mxu0
    %v783 = vadd.f32 %v575, %v782
    %v784 = vpop.f32.mrf.mxu0
    %785 = vmatprep.mubr.bf16.mxu0 0
    %786 = vmatmul.mubr.bf16.gmra.mxu0 %v551
    %v787 = vpop.f32.mrf.mxu0
    %v788 = vadd.f32 %v575, %v787
    %v789 = vpop.f32.mrf.mxu0
    %v790 = vpop.f32.mrf.mxu0
    %v791 = vadd.f32 %v575, %v790
    %v792 = vpop.f32.mrf.mxu0
    %793 = vmatprep.mubr.bf16.mxu0 0
    %794 = vmatmul.mubr.bf16.gmra.mxu0 %v552
    %v795 = vpop.f32.mrf.mxu0
    %v796 = vadd.f32 %v575, %v795
    %v797 = vpop.f32.mrf.mxu0
    %v798 = vpop.f32.mrf.mxu0
    %v799 = vadd.f32 %v575, %v798
    %v800 = vpop.f32.mrf.mxu0
    %801 = vmatprep.mubr.bf16.mxu0 0
    %802 = vmatmul.mubr.bf16.gmra.mxu0 %v553
    %v803 = vpop.f32.mrf.mxu0
    %v804 = vadd.f32 %v575, %v803
    %v805 = vpop.f32.mrf.mxu0
    %v806 = vpop.f32.mrf.mxu0
    %v807 = vadd.f32 %v575, %v806
    %v808 = vpop.f32.mrf.mxu0
    %809 = vdwg.mxu0
    %810 = vst [vmem:[#allocation8] sm:$0xff] %v660
    %811 = vst [vmem:[#allocation8 + $0x8] sm:$0xff] %v663
    %812 = vst [vmem:[#allocation8 + $0x10] sm:$0xff] %v668
    %813 = vst [vmem:[#allocation8 + $0x18] sm:$0xff] %v671
    %814 = vst [vmem:[#allocation8 + $0x20] sm:$0xff] %v676
    %815 = vst [vmem:[#allocation8 + $0x28] sm:$0xff] %v679
    %816 = vst [vmem:[#allocation8 + $0x30] sm:$0xff] %v684
    %817 = vst [vmem:[#allocation8 + $0x38] sm:$0xff] %v687
    %818 = vst [vmem:[#allocation8 + $0x40] sm:$0xff] %v692
    %819 = vst [vmem:[#allocation8 + $0x48] sm:$0xff] %v695
    %820 = vst [vmem:[#allocation8 + $0x50] sm:$0xff] %v700
    %821 = vst [vmem:[#allocation8 + $0x58] sm:$0xff] %v703
    %822 = vst [vmem:[#allocation8 + $0x60] sm:$0xff] %v708
    %823 = vst [vmem:[#allocation8 + $0x68] sm:$0xff] %v711
    %824 = vst [vmem:[#allocation8 + $0x70] sm:$0xff] %v716
    %825 = vst [vmem:[#allocation8 + $0x78] sm:$0xff] %v719
    %826 = vst [vmem:[#allocation8 + $0x80] sm:$0xff] %v724
    %827 = vst [vmem:[#allocation8 + $0x88] sm:$0xff] %v727
    %828 = vst [vmem:[#allocation8 + $0x90] sm:$0xff] %v732
    %829 = vst [vmem:[#allocation8 + $0x98] sm:$0xff] %v735
    %830 = vst [vmem:[#allocation8 + $0xa0] sm:$0xff] %v740
    %831 = vst [vmem:[#allocation8 + $0xa8] sm:$0xff] %v743
    %832 = vst [vmem:[#allocation8 + $0xb0] sm:$0xff] %v748
    %833 = vst [vmem:[#allocation8 + $0xb8] sm:$0xff] %v751
    %834 = vst [vmem:[#allocation8 + $0xc0] sm:$0xff] %v756
    %835 = vst [vmem:[#allocation8 + $0xc8] sm:$0xff] %v759
    %836 = vst [vmem:[#allocation8 + $0xd0] sm:$0xff] %v764
    %837 = vst [vmem:[#allocation8 + $0xd8] sm:$0xff] %v767
    %838 = vst [vmem:[#allocation8 + $0xe0] sm:$0xff] %v772
    %839 = vst [vmem:[#allocation8 + $0xe8] sm:$0xff] %v775
    %840 = vst [vmem:[#allocation8 + $0xf0] sm:$0xff] %v780
    %841 = vst [vmem:[#allocation8 + $0xf8] sm:$0xff] %v783
    %842 = vst [vmem:[#allocation8 + $0x100] sm:$0xff] %v788
    %843 = vst [vmem:[#allocation8 + $0x108] sm:$0xff] %v791
    %844 = vst [vmem:[#allocation8 + $0x110] sm:$0xff] %v796
    %845 = vst [vmem:[#allocation8 + $0x118] sm:$0xff] %v799
    %846 = vst [vmem:[#allocation8 + $0x120] sm:$0xff] %v804
    %847 = vst [vmem:[#allocation8 + $0x128] sm:$0xff] %v807
    // Predicated region
    $region34: #{tpu_custom_call.1} parent=1 // pred_check
      _
    $region35: #{tpu_custom_call.1} parent=1 // pred_check_branch
      %849 = sbr.rel (0) target = $region37
    $region36: #{tpu_custom_call.1} parent=1 // pred_region
      %s851 = ssub.s32 4864, 4864
      %852 = vsyncadd [#allocation4], %s851
      %s853 = sshll.u32 [#allocation8], 4
      %s854 = int_to_ptr.vmem [resolvable:$true] %s853
      %859 = dma.vmem_to_hbm [thread:$0]  %s854, 4864, %s5, [#allocation4], 128, 128, 8
    $region37: #{tpu_custom_call.1} parent=1 // pred_fallthru
      _
    // Predicated region
    $region38: #{tpu_custom_call.1} parent=1 // pred_check
      _
    $region39: #{tpu_custom_call.1} parent=1 // pred_check_branch
      %861 = sbr.rel (0) target = $region41
    $region40: #{tpu_custom_call.1} parent=1 // pred_region
      %862 = dma.done [#allocation4], 4864
    $region41: #{tpu_custom_call.1} parent=1 // pred_fallthru
      _
    %863 = vsyncpa [#allocation3], 1
    %864 = vsyncpa [#allocation6], 1
    %865 = vsyncpa [#allocation4], 1

</llo_original>
